<compile_context>
chip_gen: v7x
topology: tpu7x:2x2x1
jax: 0.10.0
libtpu: 0.0.40
codegen_flags: <defaults>
</compile_context>

<pallas_src>
import jax
import jax.numpy as jnp
import numpy as np
from jax.experimental import pallas as pl
from jax.experimental.pallas import tpu as pltpu

_OPERAND_NAMES = (
    "w1cat", "b1row", "rsel1", "csel1",
    "w2cat", "b2row", "rsel2", "csel2",
    "wf1", "bf1", "wf2", "bf2", "wf3", "bf3",
)


# ----------------------------------------------------------------------------- #
# The fused per-image LeNet kernel (one grid step = one batch element)
# ----------------------------------------------------------------------------- #
def _lenet_kernel(x_ref,                       # (1, 28, 128)  lane-padded image
                  w1_ref, b1_ref,              # (384, 156), (1, 156)
                  r1_ref, c1_ref,              # (32, 26),  (156, 256)
                  w2_ref, b2_ref,              # (384, 176), (1, 176)
                  r2_ref, c2_ref,              # (16, 11),  (176, 256)
                  wf1_ref, bf1_ref,            # (640, 120), (1, 120)
                  wf2_ref, bf2_ref,            # (120, 84),  (1, 84)
                  wf3_ref, bf3_ref,            # (84, 128),  (1, 128)
                  out_ref):                    # (1, 1, 128)
    f32 = jnp.float32
    x = x_ref[0]                                                        # (28, 128)

    # ---- conv1 + ReLU : one im2col matmul (26, 384) @ (384, 156) ----
    lhs1 = jnp.concatenate([x[dy:dy + 26, :] for dy in range(3)], axis=1)
    a1 = jnp.maximum(
        jnp.dot(lhs1, w1_ref[...], preferred_element_type=f32) + b1_ref[...], 0.0)

    # ---- 2x2 max-pool : merged even/odd selectors, 1 matmul per axis ----
    rb1 = jnp.dot(r1_ref[...], a1, preferred_element_type=f32)          # (32, 156)
    rmax1 = jnp.maximum(rb1[0:16, :], rb1[16:32, :])                    # (16, 156)
    pb1 = jnp.dot(rmax1, c1_ref[...], preferred_element_type=f32)       # (16, 256)
    p1 = jnp.maximum(pb1[:, 0:128], pb1[:, 128:256])                    # (16, 128)

    # ---- conv2 + ReLU : one im2col matmul (11, 384) @ (384, 176) ----
    lhs2 = jnp.concatenate([p1[dy:dy + 11, :] for dy in range(3)], axis=1)
    a2 = jnp.maximum(
        jnp.dot(lhs2, w2_ref[...], preferred_element_type=f32) + b2_ref[...], 0.0)

    # ---- 2x2 max-pool (floor) ----
    rb2 = jnp.dot(r2_ref[...], a2, preferred_element_type=f32)          # (16, 176)
    rmax2 = jnp.maximum(rb2[0:8, :], rb2[8:16, :])                      # (8, 176)
    pb2 = jnp.dot(rmax2, c2_ref[...], preferred_element_type=f32)       # (8, 256)
    p2 = jnp.maximum(pb2[:, 0:128], pb2[:, 128:256])                    # (8, 128)

    # ---- flatten (lane-tile aligned) -> fc1 -> fc2 -> fc3 ----
    flat = jnp.concatenate([p2[i:i + 1, :] for i in range(5)], axis=1)  # (1, 640)
    h1 = jnp.maximum(
        jnp.dot(flat, wf1_ref[...], preferred_element_type=f32) + bf1_ref[...], 0.0)
    h2 = jnp.maximum(
        jnp.dot(h1, wf2_ref[...], preferred_element_type=f32) + bf2_ref[...], 0.0)
    h3 = jnp.dot(h2, wf3_ref[...], preferred_element_type=f32) + bf3_ref[...]
    out_ref[...] = h3.reshape(1, 1, 128)


# ----------------------------------------------------------------------------- #
# One-time host-side weight preparation (pure glue, done once at init)
# ----------------------------------------------------------------------------- #
def _merged_pool_selectors(w_in, w_out, c, half_rows):
    """Merged even/odd 2x2-pool selectors for the (row, col*c + ch) slab layout.

    Row selector (2*half_rows, w_in): even-row picker at sublane 0, odd-row
    picker at sublane `half_rows` (multiple of 8).  Column selector
    (w_in*c, 256): even-col picker at lane 0, odd-col picker at lane 128.
    """
    re = np.zeros((w_out, w_in), np.float32)
    ro = np.zeros((w_out, w_in), np.float32)
    idx = np.arange(w_out)
    re[idx, 2 * idx] = 1.0
    ro[idx, 2 * idx + 1] = 1.0
    eye_c = np.eye(c, dtype=np.float32)
    ce = np.kron(re.T, eye_c)                       # (w_in*c, w_out*c)
    co = np.kron(ro.T, eye_c)
    rsel = np.zeros((2 * half_rows, w_in), np.float32)
    rsel[:w_out] = re
    rsel[half_rows:half_rows + w_out] = ro
    csel = np.zeros((w_in * c, 256), np.float32)
    csel[:, :w_out * c] = ce
    csel[:, 128:128 + w_out * c] = co
    return rsel, csel


def _banded_conv1_weights(w1):
    """(384, 156): three per-dy banded blocks, one 128-row block per lane tile."""
    blocks = []
    for dy in range(3):
        blk = np.zeros((128, 156), np.float32)
        for dx in range(3):
            # rows j+dx (input col), cols j*6+oc (output col, channel)
            blk[dx:dx + 26, :] += np.kron(
                np.eye(26, dtype=np.float32), w1[:, 0, dy, dx].reshape(1, 6))
        blocks.append(blk)
    return np.concatenate(blocks, axis=0)


def _banded_conv2_weights(w2):
    """(384, 176): three per-dy banded blocks over the (col*6 + ic) lane layout."""
    blocks = []
    for dy in range(3):
        blk = np.zeros((128, 176), np.float32)
        for dx in range(3):
            # rows (j+dx)*6+ic, cols j*16+oc
            blk[dx * 6: dx * 6 + 66, :] += np.kron(
                np.eye(11, dtype=np.float32), w2[:, :, dy, dx].T)
        blocks.append(blk)
    return np.concatenate(blocks, axis=0)


def prepare_params(p):
    """Transform torch-layout parameters into the kernel's pre-padded operands."""
    w1 = np.asarray(p["conv1_w"], np.float32)       # (6, 1, 3, 3)
    b1 = np.asarray(p["conv1_b"], np.float32)
    w2 = np.asarray(p["conv2_w"], np.float32)       # (16, 6, 3, 3)
    b2 = np.asarray(p["conv2_b"], np.float32)

    w1cat = _banded_conv1_weights(w1)               # (384, 156)
    b1row = np.tile(b1, 26).reshape(1, 156)
    w2cat = _banded_conv2_weights(w2)               # (384, 176)
    b2row = np.tile(b2, 11).reshape(1, 176)

    rsel1, csel1 = _merged_pool_selectors(26, 13, 6, 16)    # (32,26), (156,256)
    rsel2, csel2 = _merged_pool_selectors(11, 5, 16, 8)     # (16,11), (176,256)

    # fc1: torch flatten order (c*25 + i*5 + j) -> kernel lane order (i*128 + j*16 + c)
    wf1 = np.asarray(p["fc1_w"], np.float32).reshape(120, 16, 5, 5)
    wf1 = wf1.transpose(2, 3, 1, 0).reshape(5, 80, 120)
    wf1pad = np.zeros((5, 128, 120), np.float32)
    wf1pad[:, :80, :] = wf1
    wf1pad = wf1pad.reshape(640, 120)
    bf1 = np.asarray(p["fc1_b"], np.float32).reshape(1, 120)
    wf2 = np.asarray(p["fc2_w"], np.float32).T                      # (120, 84)
    bf2 = np.asarray(p["fc2_b"], np.float32).reshape(1, 84)
    # fc3: pad N 10 -> 128 for a lane-dense final store
    wf3 = np.zeros((84, 128), np.float32)
    wf3[:, :10] = np.asarray(p["fc3_w"], np.float32).T
    bf3 = np.zeros((1, 128), np.float32)
    bf3[0, :10] = np.asarray(p["fc3_b"], np.float32)

    vals = [w1cat, b1row, rsel1, csel1, w2cat, b2row, rsel2, csel2,
            wf1pad, bf1, wf2, bf2, wf3, bf3]
    return {n: jnp.asarray(v) for n, v in zip(_OPERAND_NAMES, vals)}


# ----------------------------------------------------------------------------- #
# Forward pass: one pallas_call, grid over the batch (parallel -> megacore on v7x)
# ----------------------------------------------------------------------------- #
def lenet_forward(x, prep):
    """x: (B, 1, 28, 28) float32, prep: output of prepare_params."""
    B = x.shape[0]
    ximg = x.astype(jnp.float32).reshape(B, 28, 28)
    xpad = jnp.pad(ximg, ((0, 0), (0, 0), (0, 100)))    # lane-pad W 28 -> 128

    operands = [xpad] + [prep[n] for n in _OPERAND_NAMES]
    in_specs = [pl.BlockSpec((1, 28, 128), lambda b: (b, 0, 0))]
    in_specs += [pl.BlockSpec(prep[n].shape, lambda b: (0, 0))
                 for n in _OPERAND_NAMES]

    out = pl.pallas_call(
        _lenet_kernel,
        out_shape=jax.ShapeDtypeStruct((B, 1, 128), jnp.float32),
        grid=(B,),
        in_specs=in_specs,
        out_specs=pl.BlockSpec((1, 1, 128), lambda b: (b, 0, 0)),
        compiler_params=pltpu.CompilerParams(dimension_semantics=("parallel",)),
    )(*operands)
    # TODO(synk): for large B, additionally stack several images along M inside
    # one grid step to raise MXU row occupancy beyond 26.
    return out.reshape(B, 128)[:, :10]   # strip lane padding once, outside the kernel


# ----------------------------------------------------------------------------- #
# Deterministic parameter init (PyTorch-default-style uniform(-1/sqrt(fan_in), .))
# ----------------------------------------------------------------------------- #
def init_params(key):
    def u(k, shape, fan_in):
        bound = 1.0 / np.sqrt(fan_in)
        return jax.random.uniform(k, shape, jnp.float32, -bound, bound)

    ks = jax.random.split(key, 10)
    return {
        "conv1_w": u(ks[0], (6, 1, 3, 3), 1 * 3 * 3),
        "conv1_b": u(ks[1], (6,), 1 * 3 * 3),
        "conv2_w": u(ks[2], (16, 6, 3, 3), 6 * 3 * 3),
        "conv2_b": u(ks[3], (16,), 6 * 3 * 3),
        "fc1_w": u(ks[4], (120, 400), 400),
        "fc1_b": u(ks[5], (120,), 400),
        "fc2_w": u(ks[6], (84, 120), 120),
        "fc2_b": u(ks[7], (84,), 120),
        "fc3_w": u(ks[8], (10, 84), 84),
        "fc3_b": u(ks[9], (10,), 84),
    }


# ----------------------------------------------------------------------------- #
# Pure-JAX reference (torch-equivalent) for correctness check
# ----------------------------------------------------------------------------- #
def lenet_reference(x, p):
    def conv(x, w, b):
        y = jax.lax.conv_general_dilated(
            x, w, (1, 1), "VALID", dimension_numbers=("NCHW", "OIHW", "NCHW"))
        return jnp.maximum(y + b[None, :, None, None], 0.0)

    def pool(x):
        return jax.lax.reduce_window(
            x, -jnp.inf, jax.lax.max, (1, 1, 2, 2), (1, 1, 2, 2), "VALID")

    x = pool(conv(x, p["conv1_w"], p["conv1_b"]))
    x = pool(conv(x, p["conv2_w"], p["conv2_b"]))
    x = x.reshape(x.shape[0], -1)
    x = jnp.maximum(x @ p["fc1_w"].T + p["fc1_b"], 0.0)
    x = jnp.maximum(x @ p["fc2_w"].T + p["fc2_b"], 0.0)
    return x @ p["fc3_w"].T + p["fc3_b"]


# ----------------------------------------------------------------------------- #
if __name__ == "__main__":
    # fc1 expects 16*5*5 features => the module implies 1x28x28 inputs.
    B = 2
    key = jax.random.PRNGKey(0)
    kx, kp = jax.random.split(key)
    x = jax.random.normal(kx, (B, 1, 28, 28), jnp.float32)
    params = init_params(kp)
    prep = prepare_params(params)          # one-time weight transform / padding

    fwd = jax.jit(lenet_forward)
    out = jax.block_until_ready(fwd(x, prep))
    assert out.shape == (B, 10), out.shape

    ref = jax.block_until_ready(lenet_reference(x, params))
    np.testing.assert_allclose(np.asarray(out), np.asarray(ref), rtol=1e-4, atol=1e-4)

    print("KERNEL_OK")
</pallas_src>

<mosaic_0001>
module attributes {stable_mosaic.version = 11 : i64} {
  func.func @_lenet_kernel(%arg0: i32, %arg1: memref<1x28x128xf32, #tpu.memory_space<vmem>>, %arg2: memref<384x156xf32, #tpu.memory_space<vmem>>, %arg3: memref<1x156xf32, #tpu.memory_space<vmem>>, %arg4: memref<32x26xf32, #tpu.memory_space<vmem>>, %arg5: memref<156x256xf32, #tpu.memory_space<vmem>>, %arg6: memref<384x176xf32, #tpu.memory_space<vmem>>, %arg7: memref<1x176xf32, #tpu.memory_space<vmem>>, %arg8: memref<16x11xf32, #tpu.memory_space<vmem>>, %arg9: memref<176x256xf32, #tpu.memory_space<vmem>>, %arg10: memref<640x120xf32, #tpu.memory_space<vmem>>, %arg11: memref<1x120xf32, #tpu.memory_space<vmem>>, %arg12: memref<120x84xf32, #tpu.memory_space<vmem>>, %arg13: memref<1x84xf32, #tpu.memory_space<vmem>>, %arg14: memref<84x128xf32, #tpu.memory_space<vmem>>, %arg15: memref<1x128xf32, #tpu.memory_space<vmem>>, %arg16: memref<1x1x128xf32, #tpu.memory_space<vmem>>) attributes {dimension_semantics = [#tpu.dimension_semantics<parallel>], iteration_bounds = array<i64: 2>, scalar_prefetch = 0 : i64, scratch_operands = 0 : i64, tpu.core_type = #tpu.core_type<tc>, window_params = [{transform_indices = @transform_0, window_bounds = array<i64: 1, 28, 128>}, {pipeline_mode = #tpu.pipeline_mode<synchronous>, transform_indices = @transform_1, window_bounds = array<i64: 384, 156>}, {pipeline_mode = #tpu.pipeline_mode<synchronous>, transform_indices = @transform_2, window_bounds = array<i64: 1, 156>}, {pipeline_mode = #tpu.pipeline_mode<synchronous>, transform_indices = @transform_3, window_bounds = array<i64: 32, 26>}, {pipeline_mode = #tpu.pipeline_mode<synchronous>, transform_indices = @transform_4, window_bounds = array<i64: 156, 256>}, {pipeline_mode = #tpu.pipeline_mode<synchronous>, transform_indices = @transform_5, window_bounds = array<i64: 384, 176>}, {pipeline_mode = #tpu.pipeline_mode<synchronous>, transform_indices = @transform_6, window_bounds = array<i64: 1, 176>}, {pipeline_mode = #tpu.pipeline_mode<synchronous>, transform_indices = @transform_7, window_bounds = array<i64: 16, 11>}, {pipeline_mode = #tpu.pipeline_mode<synchronous>, transform_indices = @transform_8, window_bounds = array<i64: 176, 256>}, {pipeline_mode = #tpu.pipeline_mode<synchronous>, transform_indices = @transform_9, window_bounds = array<i64: 640, 120>}, {pipeline_mode = #tpu.pipeline_mode<synchronous>, transform_indices = @transform_10, window_bounds = array<i64: 1, 120>}, {pipeline_mode = #tpu.pipeline_mode<synchronous>, transform_indices = @transform_11, window_bounds = array<i64: 120, 84>}, {pipeline_mode = #tpu.pipeline_mode<synchronous>, transform_indices = @transform_12, window_bounds = array<i64: 1, 84>}, {pipeline_mode = #tpu.pipeline_mode<synchronous>, transform_indices = @transform_13, window_bounds = array<i64: 84, 128>}, {pipeline_mode = #tpu.pipeline_mode<synchronous>, transform_indices = @transform_14, window_bounds = array<i64: 1, 128>}, {transform_indices = @transform_15, window_bounds = array<i64: 1, 1, 128>}]} {
    %c0 = arith.constant 0 : index
    %c0_0 = arith.constant 0 : index
    %c0_1 = arith.constant 0 : index
    %0 = vector.load %arg1[%c0, %c0_0, %c0_1] : memref<1x28x128xf32, #tpu.memory_space<vmem>>, vector<1x28x128xf32>
    %1 = vector.shape_cast %0 : vector<1x28x128xf32> to vector<28x128xf32>
    %2 = vector.extract_strided_slice %1 {offsets = [0, 0], sizes = [26, 128], strides = [1, 1]} : vector<28x128xf32> to vector<26x128xf32>
    %3 = vector.extract_strided_slice %1 {offsets = [1, 0], sizes = [26, 128], strides = [1, 1]} : vector<28x128xf32> to vector<26x128xf32>
    %4 = vector.extract_strided_slice %1 {offsets = [2, 0], sizes = [26, 128], strides = [1, 1]} : vector<28x128xf32> to vector<26x128xf32>
    %5 = tpu.concatenate %2, %3, %4 in 1 : vector<26x128xf32>, vector<26x128xf32>, vector<26x128xf32> -> vector<26x384xf32>
    %c0_2 = arith.constant 0 : index
    %c0_3 = arith.constant 0 : index
    %6 = vector.load %arg2[%c0_2, %c0_3] : memref<384x156xf32, #tpu.memory_space<vmem>>, vector<384x156xf32>
    %cst = arith.constant dense<0.000000e+00> : vector<26x156xf32>
    %7 = tpu.matmul %5, %6, %cst {dimension_numbers = #tpu.dot_dimension_numbers<[1], [0], [0], [1], [0, 0, 1, 1], [], []>} : vector<26x384xf32>, vector<384x156xf32>, vector<26x156xf32> -> vector<26x156xf32>
    %c0_4 = arith.constant 0 : index
    %c0_5 = arith.constant 0 : index
    %8 = vector.load %arg3[%c0_4, %c0_5] : memref<1x156xf32, #tpu.memory_space<vmem>>, vector<1x156xf32>
    %9 = vector.broadcast %8 : vector<1x156xf32> to vector<26x156xf32>
    %10 = arith.addf %7, %9 : vector<26x156xf32>
    %cst_6 = arith.constant 0.000000e+00 : f32
    %11 = vector.broadcast %cst_6 : f32 to vector<26x156xf32>
    %12 = arith.maximumf %10, %11 : vector<26x156xf32>
    %c0_7 = arith.constant 0 : index
    %c0_8 = arith.constant 0 : index
    %13 = vector.load %arg4[%c0_7, %c0_8] : memref<32x26xf32, #tpu.memory_space<vmem>>, vector<32x26xf32>
    %cst_9 = arith.constant dense<0.000000e+00> : vector<32x156xf32>
    %14 = tpu.matmul %13, %12, %cst_9 {dimension_numbers = #tpu.dot_dimension_numbers<[1], [0], [0], [1], [0, 0, 1, 1], [], []>} : vector<32x26xf32>, vector<26x156xf32>, vector<32x156xf32> -> vector<32x156xf32>
    %15 = vector.extract_strided_slice %14 {offsets = [0, 0], sizes = [16, 156], strides = [1, 1]} : vector<32x156xf32> to vector<16x156xf32>
    %16 = vector.extract_strided_slice %14 {offsets = [16, 0], sizes = [16, 156], strides = [1, 1]} : vector<32x156xf32> to vector<16x156xf32>
    %17 = arith.maximumf %15, %16 : vector<16x156xf32>
    %c0_10 = arith.constant 0 : index
    %c0_11 = arith.constant 0 : index
    %18 = vector.load %arg5[%c0_10, %c0_11] : memref<156x256xf32, #tpu.memory_space<vmem>>, vector<156x256xf32>
    %cst_12 = arith.constant dense<0.000000e+00> : vector<16x256xf32>
    %19 = tpu.matmul %17, %18, %cst_12 {dimension_numbers = #tpu.dot_dimension_numbers<[1], [0], [0], [1], [0, 0, 1, 1], [], []>} : vector<16x156xf32>, vector<156x256xf32>, vector<16x256xf32> -> vector<16x256xf32>
    %20 = vector.extract_strided_slice %19 {offsets = [0, 0], sizes = [16, 128], strides = [1, 1]} : vector<16x256xf32> to vector<16x128xf32>
    %21 = vector.extract_strided_slice %19 {offsets = [0, 128], sizes = [16, 128], strides = [1, 1]} : vector<16x256xf32> to vector<16x128xf32>
    %22 = arith.maximumf %20, %21 : vector<16x128xf32>
    %23 = vector.extract_strided_slice %22 {offsets = [0, 0], sizes = [11, 128], strides = [1, 1]} : vector<16x128xf32> to vector<11x128xf32>
    %24 = vector.extract_strided_slice %22 {offsets = [1, 0], sizes = [11, 128], strides = [1, 1]} : vector<16x128xf32> to vector<11x128xf32>
    %25 = vector.extract_strided_slice %22 {offsets = [2, 0], sizes = [11, 128], strides = [1, 1]} : vector<16x128xf32> to vector<11x128xf32>
    %26 = tpu.concatenate %23, %24, %25 in 1 : vector<11x128xf32>, vector<11x128xf32>, vector<11x128xf32> -> vector<11x384xf32>
    %c0_13 = arith.constant 0 : index
    %c0_14 = arith.constant 0 : index
    %27 = vector.load %arg6[%c0_13, %c0_14] : memref<384x176xf32, #tpu.memory_space<vmem>>, vector<384x176xf32>
    %cst_15 = arith.constant dense<0.000000e+00> : vector<11x176xf32>
    %28 = tpu.matmul %26, %27, %cst_15 {dimension_numbers = #tpu.dot_dimension_numbers<[1], [0], [0], [1], [0, 0, 1, 1], [], []>} : vector<11x384xf32>, vector<384x176xf32>, vector<11x176xf32> -> vector<11x176xf32>
    %c0_16 = arith.constant 0 : index
    %c0_17 = arith.constant 0 : index
    %29 = vector.load %arg7[%c0_16, %c0_17] : memref<1x176xf32, #tpu.memory_space<vmem>>, vector<1x176xf32>
    %30 = vector.broadcast %29 : vector<1x176xf32> to vector<11x176xf32>
    %31 = arith.addf %28, %30 : vector<11x176xf32>
    %cst_18 = arith.constant 0.000000e+00 : f32
    %32 = vector.broadcast %cst_18 : f32 to vector<11x176xf32>
    %33 = arith.maximumf %31, %32 : vector<11x176xf32>
    %c0_19 = arith.constant 0 : index
    %c0_20 = arith.constant 0 : index
    %34 = vector.load %arg8[%c0_19, %c0_20] : memref<16x11xf32, #tpu.memory_space<vmem>>, vector<16x11xf32>
    %cst_21 = arith.constant dense<0.000000e+00> : vector<16x176xf32>
    %35 = tpu.matmul %34, %33, %cst_21 {dimension_numbers = #tpu.dot_dimension_numbers<[1], [0], [0], [1], [0, 0, 1, 1], [], []>} : vector<16x11xf32>, vector<11x176xf32>, vector<16x176xf32> -> vector<16x176xf32>
    %36 = vector.extract_strided_slice %35 {offsets = [0, 0], sizes = [8, 176], strides = [1, 1]} : vector<16x176xf32> to vector<8x176xf32>
    %37 = vector.extract_strided_slice %35 {offsets = [8, 0], sizes = [8, 176], strides = [1, 1]} : vector<16x176xf32> to vector<8x176xf32>
    %38 = arith.maximumf %36, %37 : vector<8x176xf32>
    %c0_22 = arith.constant 0 : index
    %c0_23 = arith.constant 0 : index
    %39 = vector.load %arg9[%c0_22, %c0_23] : memref<176x256xf32, #tpu.memory_space<vmem>>, vector<176x256xf32>
    %cst_24 = arith.constant dense<0.000000e+00> : vector<8x256xf32>
    %40 = tpu.matmul %38, %39, %cst_24 {dimension_numbers = #tpu.dot_dimension_numbers<[1], [0], [0], [1], [0, 0, 1, 1], [], []>} : vector<8x176xf32>, vector<176x256xf32>, vector<8x256xf32> -> vector<8x256xf32>
    %41 = vector.extract_strided_slice %40 {offsets = [0, 0], sizes = [8, 128], strides = [1, 1]} : vector<8x256xf32> to vector<8x128xf32>
    %42 = vector.extract_strided_slice %40 {offsets = [0, 128], sizes = [8, 128], strides = [1, 1]} : vector<8x256xf32> to vector<8x128xf32>
    %43 = arith.maximumf %41, %42 : vector<8x128xf32>
    %44 = vector.extract_strided_slice %43 {offsets = [0, 0], sizes = [1, 128], strides = [1, 1]} : vector<8x128xf32> to vector<1x128xf32>
    %45 = vector.extract_strided_slice %43 {offsets = [1, 0], sizes = [1, 128], strides = [1, 1]} : vector<8x128xf32> to vector<1x128xf32>
    %46 = vector.extract_strided_slice %43 {offsets = [2, 0], sizes = [1, 128], strides = [1, 1]} : vector<8x128xf32> to vector<1x128xf32>
    %47 = vector.extract_strided_slice %43 {offsets = [3, 0], sizes = [1, 128], strides = [1, 1]} : vector<8x128xf32> to vector<1x128xf32>
    %48 = vector.extract_strided_slice %43 {offsets = [4, 0], sizes = [1, 128], strides = [1, 1]} : vector<8x128xf32> to vector<1x128xf32>
    %49 = tpu.concatenate %44, %45, %46, %47, %48 in 1 : vector<1x128xf32>, vector<1x128xf32>, vector<1x128xf32>, vector<1x128xf32>, vector<1x128xf32> -> vector<1x640xf32>
    %c0_25 = arith.constant 0 : index
    %c0_26 = arith.constant 0 : index
    %50 = vector.load %arg10[%c0_25, %c0_26] : memref<640x120xf32, #tpu.memory_space<vmem>>, vector<640x120xf32>
    %cst_27 = arith.constant dense<0.000000e+00> : vector<1x120xf32>
    %51 = tpu.matmul %49, %50, %cst_27 {dimension_numbers = #tpu.dot_dimension_numbers<[1], [0], [0], [1], [0, 0, 1, 1], [], []>} : vector<1x640xf32>, vector<640x120xf32>, vector<1x120xf32> -> vector<1x120xf32>
    %c0_28 = arith.constant 0 : index
    %c0_29 = arith.constant 0 : index
    %52 = vector.load %arg11[%c0_28, %c0_29] : memref<1x120xf32, #tpu.memory_space<vmem>>, vector<1x120xf32>
    %53 = arith.addf %51, %52 : vector<1x120xf32>
    %cst_30 = arith.constant 0.000000e+00 : f32
    %54 = vector.broadcast %cst_30 : f32 to vector<1x120xf32>
    %55 = arith.maximumf %53, %54 : vector<1x120xf32>
    %c0_31 = arith.constant 0 : index
    %c0_32 = arith.constant 0 : index
    %56 = vector.load %arg12[%c0_31, %c0_32] : memref<120x84xf32, #tpu.memory_space<vmem>>, vector<120x84xf32>
    %cst_33 = arith.constant dense<0.000000e+00> : vector<1x84xf32>
    %57 = tpu.matmul %55, %56, %cst_33 {dimension_numbers = #tpu.dot_dimension_numbers<[1], [0], [0], [1], [0, 0, 1, 1], [], []>} : vector<1x120xf32>, vector<120x84xf32>, vector<1x84xf32> -> vector<1x84xf32>
    %c0_34 = arith.constant 0 : index
    %c0_35 = arith.constant 0 : index
    %58 = vector.load %arg13[%c0_34, %c0_35] : memref<1x84xf32, #tpu.memory_space<vmem>>, vector<1x84xf32>
    %59 = arith.addf %57, %58 : vector<1x84xf32>
    %cst_36 = arith.constant 0.000000e+00 : f32
    %60 = vector.broadcast %cst_36 : f32 to vector<1x84xf32>
    %61 = arith.maximumf %59, %60 : vector<1x84xf32>
    %c0_37 = arith.constant 0 : index
    %c0_38 = arith.constant 0 : index
    %62 = vector.load %arg14[%c0_37, %c0_38] : memref<84x128xf32, #tpu.memory_space<vmem>>, vector<84x128xf32>
    %cst_39 = arith.constant dense<0.000000e+00> : vector<1x128xf32>
    %63 = tpu.matmul %61, %62, %cst_39 {dimension_numbers = #tpu.dot_dimension_numbers<[1], [0], [0], [1], [0, 0, 1, 1], [], []>} : vector<1x84xf32>, vector<84x128xf32>, vector<1x128xf32> -> vector<1x128xf32>
    %c0_40 = arith.constant 0 : index
    %c0_41 = arith.constant 0 : index
    %64 = vector.load %arg15[%c0_40, %c0_41] : memref<1x128xf32, #tpu.memory_space<vmem>>, vector<1x128xf32>
    %65 = arith.addf %63, %64 : vector<1x128xf32>
    %66 = vector.shape_cast %65 : vector<1x128xf32> to vector<1x1x128xf32>
    %c0_42 = arith.constant 0 : index
    %c0_43 = arith.constant 0 : index
    %c0_44 = arith.constant 0 : index
    %67 = vector.load %arg16[%c0_42, %c0_43, %c0_44] : memref<1x1x128xf32, #tpu.memory_space<vmem>>, vector<1x1x128xf32>
    tpu.vector_store %arg16[%c0_42, %c0_43, %c0_44], %66 {strides = array<i32>} : memref<1x1x128xf32, #tpu.memory_space<vmem>>, vector<1x1x128xf32>,
    return
  }
  func.func @transform_0(%arg0: i32) -> (i32, i32, i32) {
    %c0_i32 = arith.constant 0 : i32
    %c0_i32_0 = arith.constant 0 : i32
    %c0_i32_1 = arith.constant 0 : i32
    return %arg0, %c0_i32, %c0_i32_0 : i32, i32, i32
  }
  func.func @transform_1(%arg0: i32) -> (i32, i32) {
    %c0_i32 = arith.constant 0 : i32
    %c0_i32_0 = arith.constant 0 : i32
    %c0_i32_1 = arith.constant 0 : i32
    return %c0_i32, %c0_i32_0 : i32, i32
  }
  func.func @transform_2(%arg0: i32) -> (i32, i32) {
    %c0_i32 = arith.constant 0 : i32
    %c0_i32_0 = arith.constant 0 : i32
    %c0_i32_1 = arith.constant 0 : i32
    return %c0_i32, %c0_i32_0 : i32, i32
  }
  func.func @transform_3(%arg0: i32) -> (i32, i32) {
    %c0_i32 = arith.constant 0 : i32
    %c0_i32_0 = arith.constant 0 : i32
    %c0_i32_1 = arith.constant 0 : i32
    return %c0_i32, %c0_i32_0 : i32, i32
  }
  func.func @transform_4(%arg0: i32) -> (i32, i32) {
    %c0_i32 = arith.constant 0 : i32
    %c0_i32_0 = arith.constant 0 : i32
    %c0_i32_1 = arith.constant 0 : i32
    return %c0_i32, %c0_i32_0 : i32, i32
  }
  func.func @transform_5(%arg0: i32) -> (i32, i32) {
    %c0_i32 = arith.constant 0 : i32
    %c0_i32_0 = arith.constant 0 : i32
    %c0_i32_1 = arith.constant 0 : i32
    return %c0_i32, %c0_i32_0 : i32, i32
  }
  func.func @transform_6(%arg0: i32) -> (i32, i32) {
    %c0_i32 = arith.constant 0 : i32
    %c0_i32_0 = arith.constant 0 : i32
    %c0_i32_1 = arith.constant 0 : i32
    return %c0_i32, %c0_i32_0 : i32, i32
  }
  func.func @transform_7(%arg0: i32) -> (i32, i32) {
    %c0_i32 = arith.constant 0 : i32
    %c0_i32_0 = arith.constant 0 : i32
    %c0_i32_1 = arith.constant 0 : i32
    return %c0_i32, %c0_i32_0 : i32, i32
  }
  func.func @transform_8(%arg0: i32) -> (i32, i32) {
    %c0_i32 = arith.constant 0 : i32
    %c0_i32_0 = arith.constant 0 : i32
    %c0_i32_1 = arith.constant 0 : i32
    return %c0_i32, %c0_i32_0 : i32, i32
  }
  func.func @transform_9(%arg0: i32) -> (i32, i32) {
    %c0_i32 = arith.constant 0 : i32
    %c0_i32_0 = arith.constant 0 : i32
    %c0_i32_1 = arith.constant 0 : i32
    return %c0_i32, %c0_i32_0 : i32, i32
  }
  func.func @transform_10(%arg0: i32) -> (i32, i32) {
    %c0_i32 = arith.constant 0 : i32
    %c0_i32_0 = arith.constant 0 : i32
    %c0_i32_1 = arith.constant 0 : i32
    return %c0_i32, %c0_i32_0 : i32, i32
  }
  func.func @transform_11(%arg0: i32) -> (i32, i32) {
    %c0_i32 = arith.constant 0 : i32
    %c0_i32_0 = arith.constant 0 : i32
    %c0_i32_1 = arith.constant 0 : i32
    return %c0_i32, %c0_i32_0 : i32, i32
  }
  func.func @transform_12(%arg0: i32) -> (i32, i32) {
    %c0_i32 = arith.constant 0 : i32
    %c0_i32_0 = arith.constant 0 : i32
    %c0_i32_1 = arith.constant 0 : i32
    return %c0_i32, %c0_i32_0 : i32, i32
  }
  func.func @transform_13(%arg0: i32) -> (i32, i32) {
    %c0_i32 = arith.constant 0 : i32
    %c0_i32_0 = arith.constant 0 : i32
    %c0_i32_1 = arith.constant 0 : i32
    return %c0_i32, %c0_i32_0 : i32, i32
  }
  func.func @transform_14(%arg0: i32) -> (i32, i32) {
    %c0_i32 = arith.constant 0 : i32
    %c0_i32_0 = arith.constant 0 : i32
    %c0_i32_1 = arith.constant 0 : i32
    return %c0_i32, %c0_i32_0 : i32, i32
  }
  func.func @transform_15(%arg0: i32) -> (i32, i32, i32) {
    %c0_i32 = arith.constant 0 : i32
    %c0_i32_0 = arith.constant 0 : i32
    %c0_i32_1 = arith.constant 0 : i32
    return %arg0, %c0_i32, %c0_i32_0 : i32, i32, i32
  }
}

</mosaic_0001>

<llo_original>
// kernel: lenet_forward.1
$region0: #{lenet_forward.1}
  #allocation0 [shape = 'u32[]', space=smem, size = 0x4, offset = 0x4, fixed_abs, tag = 'smem constant byte address 0x4 - core index']
  #allocation1 [shape = 'u32[144,128]{1,0:T(1,128)}', space=vmem, size = 0x12000, scoped, tag = 'internal scratch']
  %s0 = inlined_call_operand.vmem [shape: f32[2,28,128], index: 0, kind: input, shape index: {}]
  %s1 = inlined_call_operand.vmem [shape: f32[384,156], index: 1, kind: input, shape index: {}]
  %s2 = inlined_call_operand.vmem [shape: f32[1,156], index: 2, kind: input, shape index: {}]
  %s3 = inlined_call_operand.vmem [shape: f32[32,26], index: 3, kind: input, shape index: {}]
  %s4 = inlined_call_operand.vmem [shape: f32[156,256], index: 4, kind: input, shape index: {}]
  %s5 = inlined_call_operand.vmem [shape: f32[384,176], index: 5, kind: input, shape index: {}]
  %s6 = inlined_call_operand.vmem [shape: f32[1,176], index: 6, kind: input, shape index: {}]
  %s7 = inlined_call_operand.vmem [shape: f32[16,11], index: 7, kind: input, shape index: {}]
  %s8 = inlined_call_operand.vmem [shape: f32[176,256], index: 8, kind: input, shape index: {}]
  %s9 = inlined_call_operand.vmem [shape: f32[640,120], index: 9, kind: input, shape index: {}]
  %s10 = inlined_call_operand.vmem [shape: f32[1,120], index: 10, kind: input, shape index: {}]
  %s11 = inlined_call_operand.vmem [shape: f32[120,84], index: 11, kind: input, shape index: {}]
  %s12 = inlined_call_operand.vmem [shape: f32[1,84], index: 12, kind: input, shape index: {}]
  %s13 = inlined_call_operand.vmem [shape: f32[84,128], index: 13, kind: input, shape index: {}]
  %s14 = inlined_call_operand.vmem [shape: f32[1,128], index: 14, kind: input, shape index: {}]
  %s15 = inlined_call_operand.hbm [shape: f32[2,1,128], index: 15, kind: output, shape index: {}]
  %s16 = sld [smem:[#allocation0]]
  $region93: #{lenet_forward.1} parent=0
    _
  %s18 = ssub.s32 1, %s16
  %s19 = scalar_select 0, %s18, %s16
  $region1: #{lenet_forward.1} parent=0
    #allocation2 [shape = 'u8[1024]{0}', space=vmem, size = 0x400, scoped, tag = 'output window, operand 0']
    #allocation3 [shape = 's32[2]{0}', space=sflag, size = 0x8, scoped, tag = 'scoped memory for lenet_forward.1']
    %20 = vsyncpa [#allocation3], 0
    %s21 = scalar_lea.sflag [#allocation3], 1
    %22 = vsyncpa %s21, 0
    loop: start=0, step=1, limit=4
    $region2: #{lenet_forward.1} parent=1 // loop_pre_header
      _
    $region3: #{lenet_forward.1} parent=1 // loop_header
      %s24 = sphi 0, %s28
      %p25 = scmp.ge.s32.totalorder %s24, 4
      %s34 = sphi 0, %s36
      %s37 = sphi 0, %s34
      %s38 = sphi 0, %s37
      %s54 = sphi 0, %s38
      %s58 = sphi 0, %s58
      %s60 = sphi 0, %s58
      %s61 = sphi 0, %s60
      %s75 = sphi 0, %s61
      %s79 = sphi 0, %s79
      %s81 = sphi 0, %s79
      %s82 = sphi 0, %s81
      %s96 = sphi 0, %s82
      %s100 = sphi 0, %s100
      %s102 = sphi 0, %s100
      %s103 = sphi 0, %s102
      %s117 = sphi 0, %s103
      %s121 = sphi 0, %s121
      %s123 = sphi 0, %s121
      %s124 = sphi 0, %s123
      %s138 = sphi 0, %s124
      %s142 = sphi 0, %s142
      %s144 = sphi 0, %s142
      %s145 = sphi 0, %s144
      %s159 = sphi 0, %s145
      %s163 = sphi 0, %s163
      %s165 = sphi 0, %s163
      %s166 = sphi 0, %s165
      %s180 = sphi 0, %s166
      %s184 = sphi 0, %s184
      %s186 = sphi 0, %s184
      %s187 = sphi 0, %s186
      %s201 = sphi 0, %s187
      %s205 = sphi 0, %s205
      %s207 = sphi 0, %s205
      %s208 = sphi 0, %s207
      %s222 = sphi 0, %s208
      %s226 = sphi 0, %s226
      %s228 = sphi 0, %s226
      %s229 = sphi 0, %s228
      %s243 = sphi 0, %s229
      %s247 = sphi 0, %s247
      %s249 = sphi 0, %s247
      %s250 = sphi 0, %s249
      %s264 = sphi 0, %s250
      %s268 = sphi 0, %s268
      %s270 = sphi 0, %s268
      %s271 = sphi 0, %s270
      %s285 = sphi 0, %s271
      %s289 = sphi 0, %s289
      %s291 = sphi 0, %s289
      %s292 = sphi 0, %s291
      %s306 = sphi 0, %s292
      %s310 = sphi 0, %s310
      %s312 = sphi 0, %s310
      %s313 = sphi 0, %s312
      %s327 = sphi 0, %s313
      %s331 = sphi 0, %s331
      %s333 = sphi 0, %s331
      %s334 = sphi 0, %s333
      %s348 = sphi 0, %s334
      %s354 = sphi 0, %s356
      %s357 = sphi 0, %s354
      %s358 = sphi 0, %s357
      %s374 = sphi 0, %s358
    $region4: #{lenet_forward.1} parent=1 // loop_header_branch
      %27 = sbr.rel (%p25) target = $region8
    $region5: #{lenet_forward.1} parent=1 // loop_body
      %s29 = ssub.s32 %s24, 1
      %s30 = ssub.s32 %s24, 2
      %s31 = sadd.s32 %s24, 1
      %s32 = ssub.s32 %s24, %s31
      %p33 = scmp.eq.s32.totalorder %s32, 0
      %s35 = sadd.s32 %s34, 1
      %s36 = scalar_select %p33, %s34, %s35
      %p39 = pneg %p33
      %p40 = scmp.eq.s32.totalorder %s24, 1
      %p41 = por %p39, %p40
      %p42 = scmp.ne.s32.totalorder %s34, %s37
      %p43 = scmp.eq.s32.totalorder %s24, 0
      %p44 = por %p42, %p43
      %p45 = scmp.ne.s32.totalorder %s34, %s37
      %p46 = scmp.eq.s32.totalorder %s29, 1
      %p47 = por %p45, %p46
      %p48 = scmp.ne.s32.totalorder %s37, %s38
      %p49 = scmp.eq.s32.totalorder %s29, 0
      %p50 = por %p48, %p49
      %p51 = scmp.ne.s32.totalorder %s37, %s38
      %p52 = scmp.eq.s32.totalorder %s30, 1
      %p53 = por %p51, %p52
      %p55 = scmp.ne.s32.totalorder %s38, %s54
      %p56 = scmp.eq.s32.totalorder %s30, 0
      %p57 = por %p55, %p56
      %s59 = sadd.s32 %s58, 1
      %p62 = scmp.eq.s32.totalorder %s24, 1
      %p63 = scmp.ne.s32.totalorder %s58, %s60
      %p64 = scmp.eq.s32.totalorder %s24, 0
      %p65 = por %p63, %p64
      %p66 = scmp.ne.s32.totalorder %s58, %s60
      %p67 = scmp.eq.s32.totalorder %s29, 1
      %p68 = por %p66, %p67
      %p69 = scmp.ne.s32.totalorder %s60, %s61
      %p70 = scmp.eq.s32.totalorder %s29, 0
      %p71 = por %p69, %p70
      %p72 = scmp.ne.s32.totalorder %s60, %s61
      %p73 = scmp.eq.s32.totalorder %s30, 1
      %p74 = por %p72, %p73
      %p76 = scmp.ne.s32.totalorder %s61, %s75
      %p77 = scmp.eq.s32.totalorder %s30, 0
      %p78 = por %p76, %p77
      %s80 = sadd.s32 %s79, 1
      %p83 = scmp.eq.s32.totalorder %s24, 1
      %p84 = scmp.ne.s32.totalorder %s79, %s81
      %p85 = scmp.eq.s32.totalorder %s24, 0
      %p86 = por %p84, %p85
      %p87 = scmp.ne.s32.totalorder %s79, %s81
      %p88 = scmp.eq.s32.totalorder %s29, 1
      %p89 = por %p87, %p88
      %p90 = scmp.ne.s32.totalorder %s81, %s82
      %p91 = scmp.eq.s32.totalorder %s29, 0
      %p92 = por %p90, %p91
      %p93 = scmp.ne.s32.totalorder %s81, %s82
      %p94 = scmp.eq.s32.totalorder %s30, 1
      %p95 = por %p93, %p94
      %p97 = scmp.ne.s32.totalorder %s82, %s96
      %p98 = scmp.eq.s32.totalorder %s30, 0
      %p99 = por %p97, %p98
      %s101 = sadd.s32 %s100, 1
      %p104 = scmp.eq.s32.totalorder %s24, 1
      %p105 = scmp.ne.s32.totalorder %s100, %s102
      %p106 = scmp.eq.s32.totalorder %s24, 0
      %p107 = por %p105, %p106
      %p108 = scmp.ne.s32.totalorder %s100, %s102
      %p109 = scmp.eq.s32.totalorder %s29, 1
      %p110 = por %p108, %p109
      %p111 = scmp.ne.s32.totalorder %s102, %s103
      %p112 = scmp.eq.s32.totalorder %s29, 0
      %p113 = por %p111, %p112
      %p114 = scmp.ne.s32.totalorder %s102, %s103
      %p115 = scmp.eq.s32.totalorder %s30, 1
      %p116 = por %p114, %p115
      %p118 = scmp.ne.s32.totalorder %s103, %s117
      %p119 = scmp.eq.s32.totalorder %s30, 0
      %p120 = por %p118, %p119
      %s122 = sadd.s32 %s121, 1
      %p125 = scmp.eq.s32.totalorder %s24, 1
      %p126 = scmp.ne.s32.totalorder %s121, %s123
      %p127 = scmp.eq.s32.totalorder %s24, 0
      %p128 = por %p126, %p127
      %p129 = scmp.ne.s32.totalorder %s121, %s123
      %p130 = scmp.eq.s32.totalorder %s29, 1
      %p131 = por %p129, %p130
      %p132 = scmp.ne.s32.totalorder %s123, %s124
      %p133 = scmp.eq.s32.totalorder %s29, 0
      %p134 = por %p132, %p133
      %p135 = scmp.ne.s32.totalorder %s123, %s124
      %p136 = scmp.eq.s32.totalorder %s30, 1
      %p137 = por %p135, %p136
      %p139 = scmp.ne.s32.totalorder %s124, %s138
      %p140 = scmp.eq.s32.totalorder %s30, 0
      %p141 = por %p139, %p140
      %s143 = sadd.s32 %s142, 1
      %p146 = scmp.eq.s32.totalorder %s24, 1
      %p147 = scmp.ne.s32.totalorder %s142, %s144
      %p148 = scmp.eq.s32.totalorder %s24, 0
      %p149 = por %p147, %p148
      %p150 = scmp.ne.s32.totalorder %s142, %s144
      %p151 = scmp.eq.s32.totalorder %s29, 1
      %p152 = por %p150, %p151
      %p153 = scmp.ne.s32.totalorder %s144, %s145
      %p154 = scmp.eq.s32.totalorder %s29, 0
      %p155 = por %p153, %p154
      %p156 = scmp.ne.s32.totalorder %s144, %s145
      %p157 = scmp.eq.s32.totalorder %s30, 1
      %p158 = por %p156, %p157
      %p160 = scmp.ne.s32.totalorder %s145, %s159
      %p161 = scmp.eq.s32.totalorder %s30, 0
      %p162 = por %p160, %p161
      %s164 = sadd.s32 %s163, 1
      %p167 = scmp.eq.s32.totalorder %s24, 1
      %p168 = scmp.ne.s32.totalorder %s163, %s165
      %p169 = scmp.eq.s32.totalorder %s24, 0
      %p170 = por %p168, %p169
      %p171 = scmp.ne.s32.totalorder %s163, %s165
      %p172 = scmp.eq.s32.totalorder %s29, 1
      %p173 = por %p171, %p172
      %p174 = scmp.ne.s32.totalorder %s165, %s166
      %p175 = scmp.eq.s32.totalorder %s29, 0
      %p176 = por %p174, %p175
      %p177 = scmp.ne.s32.totalorder %s165, %s166
      %p178 = scmp.eq.s32.totalorder %s30, 1
      %p179 = por %p177, %p178
      %p181 = scmp.ne.s32.totalorder %s166, %s180
      %p182 = scmp.eq.s32.totalorder %s30, 0
      %p183 = por %p181, %p182
      %s185 = sadd.s32 %s184, 1
      %p188 = scmp.eq.s32.totalorder %s24, 1
      %p189 = scmp.ne.s32.totalorder %s184, %s186
      %p190 = scmp.eq.s32.totalorder %s24, 0
      %p191 = por %p189, %p190
      %p192 = scmp.ne.s32.totalorder %s184, %s186
      %p193 = scmp.eq.s32.totalorder %s29, 1
      %p194 = por %p192, %p193
      %p195 = scmp.ne.s32.totalorder %s186, %s187
      %p196 = scmp.eq.s32.totalorder %s29, 0
      %p197 = por %p195, %p196
      %p198 = scmp.ne.s32.totalorder %s186, %s187
      %p199 = scmp.eq.s32.totalorder %s30, 1
      %p200 = por %p198, %p199
      %p202 = scmp.ne.s32.totalorder %s187, %s201
      %p203 = scmp.eq.s32.totalorder %s30, 0
      %p204 = por %p202, %p203
      %s206 = sadd.s32 %s205, 1
      %p209 = scmp.eq.s32.totalorder %s24, 1
      %p210 = scmp.ne.s32.totalorder %s205, %s207
      %p211 = scmp.eq.s32.totalorder %s24, 0
      %p212 = por %p210, %p211
      %p213 = scmp.ne.s32.totalorder %s205, %s207
      %p214 = scmp.eq.s32.totalorder %s29, 1
      %p215 = por %p213, %p214
      %p216 = scmp.ne.s32.totalorder %s207, %s208
      %p217 = scmp.eq.s32.totalorder %s29, 0
      %p218 = por %p216, %p217
      %p219 = scmp.ne.s32.totalorder %s207, %s208
      %p220 = scmp.eq.s32.totalorder %s30, 1
      %p221 = por %p219, %p220
      %p223 = scmp.ne.s32.totalorder %s208, %s222
      %p224 = scmp.eq.s32.totalorder %s30, 0
      %p225 = por %p223, %p224
      %s227 = sadd.s32 %s226, 1
      %p230 = scmp.eq.s32.totalorder %s24, 1
      %p231 = scmp.ne.s32.totalorder %s226, %s228
      %p232 = scmp.eq.s32.totalorder %s24, 0
      %p233 = por %p231, %p232
      %p234 = scmp.ne.s32.totalorder %s226, %s228
      %p235 = scmp.eq.s32.totalorder %s29, 1
      %p236 = por %p234, %p235
      %p237 = scmp.ne.s32.totalorder %s228, %s229
      %p238 = scmp.eq.s32.totalorder %s29, 0
      %p239 = por %p237, %p238
      %p240 = scmp.ne.s32.totalorder %s228, %s229
      %p241 = scmp.eq.s32.totalorder %s30, 1
      %p242 = por %p240, %p241
      %p244 = scmp.ne.s32.totalorder %s229, %s243
      %p245 = scmp.eq.s32.totalorder %s30, 0
      %p246 = por %p244, %p245
      %s248 = sadd.s32 %s247, 1
      %p251 = scmp.eq.s32.totalorder %s24, 1
      %p252 = scmp.ne.s32.totalorder %s247, %s249
      %p253 = scmp.eq.s32.totalorder %s24, 0
      %p254 = por %p252, %p253
      %p255 = scmp.ne.s32.totalorder %s247, %s249
      %p256 = scmp.eq.s32.totalorder %s29, 1
      %p257 = por %p255, %p256
      %p258 = scmp.ne.s32.totalorder %s249, %s250
      %p259 = scmp.eq.s32.totalorder %s29, 0
      %p260 = por %p258, %p259
      %p261 = scmp.ne.s32.totalorder %s249, %s250
      %p262 = scmp.eq.s32.totalorder %s30, 1
      %p263 = por %p261, %p262
      %p265 = scmp.ne.s32.totalorder %s250, %s264
      %p266 = scmp.eq.s32.totalorder %s30, 0
      %p267 = por %p265, %p266
      %s269 = sadd.s32 %s268, 1
      %p272 = scmp.eq.s32.totalorder %s24, 1
      %p273 = scmp.ne.s32.totalorder %s268, %s270
      %p274 = scmp.eq.s32.totalorder %s24, 0
      %p275 = por %p273, %p274
      %p276 = scmp.ne.s32.totalorder %s268, %s270
      %p277 = scmp.eq.s32.totalorder %s29, 1
      %p278 = por %p276, %p277
      %p279 = scmp.ne.s32.totalorder %s270, %s271
      %p280 = scmp.eq.s32.totalorder %s29, 0
      %p281 = por %p279, %p280
      %p282 = scmp.ne.s32.totalorder %s270, %s271
      %p283 = scmp.eq.s32.totalorder %s30, 1
      %p284 = por %p282, %p283
      %p286 = scmp.ne.s32.totalorder %s271, %s285
      %p287 = scmp.eq.s32.totalorder %s30, 0
      %p288 = por %p286, %p287
      %s290 = sadd.s32 %s289, 1
      %p293 = scmp.eq.s32.totalorder %s24, 1
      %p294 = scmp.ne.s32.totalorder %s289, %s291
      %p295 = scmp.eq.s32.totalorder %s24, 0
      %p296 = por %p294, %p295
      %p297 = scmp.ne.s32.totalorder %s289, %s291
      %p298 = scmp.eq.s32.totalorder %s29, 1
      %p299 = por %p297, %p298
      %p300 = scmp.ne.s32.totalorder %s291, %s292
      %p301 = scmp.eq.s32.totalorder %s29, 0
      %p302 = por %p300, %p301
      %p303 = scmp.ne.s32.totalorder %s291, %s292
      %p304 = scmp.eq.s32.totalorder %s30, 1
      %p305 = por %p303, %p304
      %p307 = scmp.ne.s32.totalorder %s292, %s306
      %p308 = scmp.eq.s32.totalorder %s30, 0
      %p309 = por %p307, %p308
      %s311 = sadd.s32 %s310, 1
      %p314 = scmp.eq.s32.totalorder %s24, 1
      %p315 = scmp.ne.s32.totalorder %s310, %s312
      %p316 = scmp.eq.s32.totalorder %s24, 0
      %p317 = por %p315, %p316
      %p318 = scmp.ne.s32.totalorder %s310, %s312
      %p319 = scmp.eq.s32.totalorder %s29, 1
      %p320 = por %p318, %p319
      %p321 = scmp.ne.s32.totalorder %s312, %s313
      %p322 = scmp.eq.s32.totalorder %s29, 0
      %p323 = por %p321, %p322
      %p324 = scmp.ne.s32.totalorder %s312, %s313
      %p325 = scmp.eq.s32.totalorder %s30, 1
      %p326 = por %p324, %p325
      %p328 = scmp.ne.s32.totalorder %s313, %s327
      %p329 = scmp.eq.s32.totalorder %s30, 0
      %p330 = por %p328, %p329
      %s332 = sadd.s32 %s331, 1
      %p335 = scmp.eq.s32.totalorder %s24, 1
      %p336 = scmp.ne.s32.totalorder %s331, %s333
      %p337 = scmp.eq.s32.totalorder %s24, 0
      %p338 = por %p336, %p337
      %p339 = scmp.ne.s32.totalorder %s331, %s333
      %p340 = scmp.eq.s32.totalorder %s29, 1
      %p341 = por %p339, %p340
      %p342 = scmp.ne.s32.totalorder %s333, %s334
      %p343 = scmp.eq.s32.totalorder %s29, 0
      %p344 = por %p342, %p343
      %p345 = scmp.ne.s32.totalorder %s333, %s334
      %p346 = scmp.eq.s32.totalorder %s30, 1
      %p347 = por %p345, %p346
      %p349 = scmp.ne.s32.totalorder %s334, %s348
      %p350 = scmp.eq.s32.totalorder %s30, 0
      %p351 = por %p349, %p350
      %s352 = ssub.s32 %s24, %s31
      %p353 = scmp.eq.s32.totalorder %s352, 0
      %s355 = sadd.s32 %s354, 1
      %s356 = scalar_select %p353, %s354, %s355
      %p359 = pneg %p353
      %p360 = scmp.eq.s32.totalorder %s24, 1
      %p361 = por %p359, %p360
      %p362 = scmp.ne.s32.totalorder %s354, %s357
      %p363 = scmp.eq.s32.totalorder %s24, 0
      %p364 = por %p362, %p363
      %p365 = scmp.ne.s32.totalorder %s354, %s357
      %p366 = scmp.eq.s32.totalorder %s29, 1
      %p367 = por %p365, %p366
      %p368 = scmp.ne.s32.totalorder %s357, %s358
      %p369 = scmp.eq.s32.totalorder %s29, 0
      %p370 = por %p368, %p369
      %p371 = scmp.ne.s32.totalorder %s357, %s358
      %p372 = scmp.eq.s32.totalorder %s30, 1
      %p373 = por %p371, %p372
      %p375 = scmp.ne.s32.totalorder %s358, %s374
      %p376 = scmp.eq.s32.totalorder %s30, 0
      %p377 = por %p375, %p376
      %p378 = scmp.le.s32.totalorder 1, %s24
      %p379 = scmp.lt.s32.totalorder %s24, 3
      %p380 = pnand %p378, %p379
      %p381 = pneg %p380
      // Predicated region
      $region9: #{lenet_forward.1} parent=5 // pred_check
        _
      $region10: #{lenet_forward.1} parent=5 // pred_check_branch
        %383 = sbr.rel (%p380) target = $region12
      $region11: #{lenet_forward.1} parent=5 // pred_region
        %s384 = ssub.s32 %s24, 1
        // Predicated region
        $region13: #{lenet_forward.1} parent=11 // pred_check
          %p385 = pneg %p71
        $region14: #{lenet_forward.1} parent=11 // pred_check_branch
          %387 = sbr.rel (%p385) target = $region16
        $region15: #{lenet_forward.1} parent=11 // pred_region
          _
        $region16: #{lenet_forward.1} parent=11 // pred_fallthru
          _
        // Predicated region
        $region17: #{lenet_forward.1} parent=11 // pred_check
          %p388 = pneg %p92
        $region18: #{lenet_forward.1} parent=11 // pred_check_branch
          %390 = sbr.rel (%p388) target = $region20
        $region19: #{lenet_forward.1} parent=11 // pred_region
          _
        $region20: #{lenet_forward.1} parent=11 // pred_fallthru
          _
        // Predicated region
        $region21: #{lenet_forward.1} parent=11 // pred_check
          %p391 = pneg %p113
        $region22: #{lenet_forward.1} parent=11 // pred_check_branch
          %393 = sbr.rel (%p391) target = $region24
        $region23: #{lenet_forward.1} parent=11 // pred_region
          _
        $region24: #{lenet_forward.1} parent=11 // pred_fallthru
          _
        // Predicated region
        $region25: #{lenet_forward.1} parent=11 // pred_check
          %p394 = pneg %p134
        $region26: #{lenet_forward.1} parent=11 // pred_check_branch
          %396 = sbr.rel (%p394) target = $region28
        $region27: #{lenet_forward.1} parent=11 // pred_region
          _
        $region28: #{lenet_forward.1} parent=11 // pred_fallthru
          _
        // Predicated region
        $region29: #{lenet_forward.1} parent=11 // pred_check
          %p397 = pneg %p155
        $region30: #{lenet_forward.1} parent=11 // pred_check_branch
          %399 = sbr.rel (%p397) target = $region32
        $region31: #{lenet_forward.1} parent=11 // pred_region
          _
        $region32: #{lenet_forward.1} parent=11 // pred_fallthru
          _
        // Predicated region
        $region33: #{lenet_forward.1} parent=11 // pred_check
          %p400 = pneg %p176
        $region34: #{lenet_forward.1} parent=11 // pred_check_branch
          %402 = sbr.rel (%p400) target = $region36
        $region35: #{lenet_forward.1} parent=11 // pred_region
          _
        $region36: #{lenet_forward.1} parent=11 // pred_fallthru
          _
        // Predicated region
        $region37: #{lenet_forward.1} parent=11 // pred_check
          %p403 = pneg %p197
        $region38: #{lenet_forward.1} parent=11 // pred_check_branch
          %405 = sbr.rel (%p403) target = $region40
        $region39: #{lenet_forward.1} parent=11 // pred_region
          _
        $region40: #{lenet_forward.1} parent=11 // pred_fallthru
          _
        // Predicated region
        $region41: #{lenet_forward.1} parent=11 // pred_check
          %p406 = pneg %p218
        $region42: #{lenet_forward.1} parent=11 // pred_check_branch
          %408 = sbr.rel (%p406) target = $region44
        $region43: #{lenet_forward.1} parent=11 // pred_region
          _
        $region44: #{lenet_forward.1} parent=11 // pred_fallthru
          _
        // Predicated region
        $region45: #{lenet_forward.1} parent=11 // pred_check
          %p409 = pneg %p239
        $region46: #{lenet_forward.1} parent=11 // pred_check_branch
          %411 = sbr.rel (%p409) target = $region48
        $region47: #{lenet_forward.1} parent=11 // pred_region
          _
        $region48: #{lenet_forward.1} parent=11 // pred_fallthru
          _
        // Predicated region
        $region49: #{lenet_forward.1} parent=11 // pred_check
          %p412 = pneg %p260
        $region50: #{lenet_forward.1} parent=11 // pred_check_branch
          %414 = sbr.rel (%p412) target = $region52
        $region51: #{lenet_forward.1} parent=11 // pred_region
          _
        $region52: #{lenet_forward.1} parent=11 // pred_fallthru
          _
        // Predicated region
        $region53: #{lenet_forward.1} parent=11 // pred_check
          %p415 = pneg %p281
        $region54: #{lenet_forward.1} parent=11 // pred_check_branch
          %417 = sbr.rel (%p415) target = $region56
        $region55: #{lenet_forward.1} parent=11 // pred_region
          _
        $region56: #{lenet_forward.1} parent=11 // pred_fallthru
          _
        // Predicated region
        $region57: #{lenet_forward.1} parent=11 // pred_check
          %p418 = pneg %p302
        $region58: #{lenet_forward.1} parent=11 // pred_check_branch
          %420 = sbr.rel (%p418) target = $region60
        $region59: #{lenet_forward.1} parent=11 // pred_region
          _
        $region60: #{lenet_forward.1} parent=11 // pred_fallthru
          _
        // Predicated region
        $region61: #{lenet_forward.1} parent=11 // pred_check
          %p421 = pneg %p323
        $region62: #{lenet_forward.1} parent=11 // pred_check_branch
          %423 = sbr.rel (%p421) target = $region64
        $region63: #{lenet_forward.1} parent=11 // pred_region
          _
        $region64: #{lenet_forward.1} parent=11 // pred_fallthru
          _
        // Predicated region
        $region65: #{lenet_forward.1} parent=11 // pred_check
          %p424 = pneg %p344
        $region66: #{lenet_forward.1} parent=11 // pred_check_branch
          %426 = sbr.rel (%p424) target = $region68
        $region67: #{lenet_forward.1} parent=11 // pred_region
          _
        $region68: #{lenet_forward.1} parent=11 // pred_fallthru
          _
      $region12: #{lenet_forward.1} parent=5 // pred_fallthru
        _
      %p427 = scmp.lt.s32.totalorder %s24, 2
      // Predicated region
      $region69: #{lenet_forward.1} parent=5 // pred_check
        %p428 = pneg %p427
      $region70: #{lenet_forward.1} parent=5 // pred_check_branch
        %430 = sbr.rel (%p428) target = $region72
      $region71: #{lenet_forward.1} parent=5 // pred_region
        // Predicated region
        $region73: #{lenet_forward.1} parent=71 // pred_check
          %p431 = pneg %p44
        $region74: #{lenet_forward.1} parent=71 // pred_check_branch
          %433 = sbr.rel (%p431) target = $region76
        $region75: #{lenet_forward.1} parent=71 // pred_region
          %p434 = scmp.lt.s32.totalorder %s24, 1
          %s435 = scalar_select %p434, %s24, 1
          %s436 = smul.addr %s435, 4
          %s437 = smul.addr %s436, 8
          %s438 = scalar_lea.vmem %s0, %s437
        $region76: #{lenet_forward.1} parent=71 // pred_fallthru
          _
      $region72: #{lenet_forward.1} parent=5 // pred_fallthru
        _
      %p439 = scmp.le.s32.totalorder 1, %s24
      %p440 = scmp.lt.s32.totalorder %s24, 3
      %p441 = pnand %p439, %p440
      %p442 = pneg %p441
      // Predicated region
      $region77: #{lenet_forward.1} parent=5 // pred_check
        _
      $region78: #{lenet_forward.1} parent=5 // pred_check_branch
        %444 = sbr.rel (%p441) target = $region80
      $region79: #{lenet_forward.1} parent=5 // pred_region
        %s445 = ssub.s32 %s24, 1
        %p446 = scmp.lt.s32.totalorder %s29, 1
        %s447 = scalar_select %p446, %s29, 1
        %s448 = smul.addr %s447, 4
        %s449 = smul.addr %s448, 8
        %s450 = scalar_lea.vmem %s0, %s449
        %p451 = pneg %p50
        %p452 = pneg %p47
        %p453 = pneg %p71
        %p454 = pneg %p68
        %p455 = pneg %p92
        %p456 = pneg %p89
        %p457 = pneg %p113
        %p458 = pneg %p110
        %p459 = pneg %p134
        %p460 = pneg %p131
        %p461 = pneg %p155
        %p462 = pneg %p152
        %p463 = pneg %p176
        %p464 = pneg %p173
        %p465 = pneg %p197
        %p466 = pneg %p194
        %p467 = pneg %p218
        %p468 = pneg %p215
        %p469 = pneg %p239
        %p470 = pneg %p236
        %p471 = pneg %p260
        %p472 = pneg %p257
        %p473 = pneg %p281
        %p474 = pneg %p278
        %p475 = pneg %p302
        %p476 = pneg %p299
        %p477 = pneg %p323
        %p478 = pneg %p320
        %p479 = pneg %p344
        %p480 = pneg %p341
        %p481 = pneg %p370
        %p482 = pneg %p367
        %s483 = sand.u32 %s357, 1
        %s484 = scalar_lea.sflag [#allocation3], %s483
        %s485 = sand.u32 %s357, 1
        %s486 = scalar_lea.vmem [#allocation2], %s485
        %p487 = scmp.lt.s32.totalorder %s29, 1
        %s488 = scalar_select %p487, %s29, 1
        %s489 = smul.addr %s488, 4
        %s490 = smul.addr %s489, 8
        %s491 = scalar_lea.vmem %s0, %s490
        %v492 = vld [vmem:[%s491] sm:$0xff]
        %v493 = vld [vmem:[%s491 + $0x8] sm:$0xff]
        %v494 = vld [vmem:[%s491 + $0x10] sm:$0xff]
        %v495 = vld [vmem:[%s491 + $0x18] sm:$0xf]
        %vm500 = vcmask 1046528
        %v501 = vrot.slane %v492, 1
        %v502 = vrot.slane %v493, 1
        %v503 = vsel %vm500, %v501, %v502
        %v504 = vrot.slane %v494, 1
        %v505 = vsel %vm500, %v502, %v504
        %v506 = vrot.slane %v495, 1
        %v507 = vsel %vm500, %v504, %v506
        %vm512 = vcmask 1045504
        %v513 = vrot.slane %v492, 2
        %v514 = vrot.slane %v493, 2
        %v515 = vsel %vm512, %v513, %v514
        %v516 = vrot.slane %v494, 2
        %v517 = vsel %vm512, %v514, %v516
        %v518 = vrot.slane %v495, 2
        %v519 = vsel %vm512, %v516, %v518
        %v524 = vld [vmem:[%s1] sm:$0xff]
        %v525 = vld [vmem:[%s1 + $0x8] sm:$0xff]
        %v526 = vld [vmem:[%s1 + $0x10] sm:$0xff]
        %v527 = vld [vmem:[%s1 + $0x18] sm:$0xff]
        %v528 = vld [vmem:[%s1 + $0x20] sm:$0xff]
        %v529 = vld [vmem:[%s1 + $0x28] sm:$0xff]
        %v530 = vld [vmem:[%s1 + $0x30] sm:$0xff]
        %v531 = vld [vmem:[%s1 + $0x38] sm:$0xff]
        %v532 = vld [vmem:[%s1 + $0x40] sm:$0xff]
        %v533 = vld [vmem:[%s1 + $0x48] sm:$0xff]
        %v534 = vld [vmem:[%s1 + $0x50] sm:$0xff]
        %v535 = vld [vmem:[%s1 + $0x58] sm:$0xff]
        %v536 = vld [vmem:[%s1 + $0x60] sm:$0xff]
        %v537 = vld [vmem:[%s1 + $0x68] sm:$0xff]
        %v538 = vld [vmem:[%s1 + $0x70] sm:$0xff]
        %v539 = vld [vmem:[%s1 + $0x78] sm:$0xff]
        %v540 = vld [vmem:[%s1 + $0x80] sm:$0xff]
        %v541 = vld [vmem:[%s1 + $0x88] sm:$0xff]
        %v542 = vld [vmem:[%s1 + $0x90] sm:$0xff]
        %v543 = vld [vmem:[%s1 + $0x98] sm:$0xff]
        %v544 = vld [vmem:[%s1 + $0xa0] sm:$0xff]
        %v545 = vld [vmem:[%s1 + $0xa8] sm:$0xff]
        %v546 = vld [vmem:[%s1 + $0xb0] sm:$0xff]
        %v547 = vld [vmem:[%s1 + $0xb8] sm:$0xff]
        %v548 = vld [vmem:[%s1 + $0xc0] sm:$0xff]
        %v549 = vld [vmem:[%s1 + $0xc8] sm:$0xff]
        %v550 = vld [vmem:[%s1 + $0xd0] sm:$0xff]
        %v551 = vld [vmem:[%s1 + $0xd8] sm:$0xff]
        %v552 = vld [vmem:[%s1 + $0xe0] sm:$0xff]
        %v553 = vld [vmem:[%s1 + $0xe8] sm:$0xff]
        %v554 = vld [vmem:[%s1 + $0xf0] sm:$0xff]
        %v555 = vld [vmem:[%s1 + $0xf8] sm:$0xff]
        %v556 = vld [vmem:[%s1 + $0x100] sm:$0xff]
        %v557 = vld [vmem:[%s1 + $0x108] sm:$0xff]
        %v558 = vld [vmem:[%s1 + $0x110] sm:$0xff]
        %v559 = vld [vmem:[%s1 + $0x118] sm:$0xff]
        %v560 = vld [vmem:[%s1 + $0x120] sm:$0xff]
        %v561 = vld [vmem:[%s1 + $0x128] sm:$0xff]
        %v562 = vld [vmem:[%s1 + $0x130] sm:$0xff]
        %v563 = vld [vmem:[%s1 + $0x138] sm:$0xff]
        %v564 = vld [vmem:[%s1 + $0x140] sm:$0xff]
        %v565 = vld [vmem:[%s1 + $0x148] sm:$0xff]
        %v566 = vld [vmem:[%s1 + $0x150] sm:$0xff]
        %v567 = vld [vmem:[%s1 + $0x158] sm:$0xff]
        %v568 = vld [vmem:[%s1 + $0x160] sm:$0xff]
        %v569 = vld [vmem:[%s1 + $0x168] sm:$0xff]
        %v570 = vld [vmem:[%s1 + $0x170] sm:$0xff]
        %v571 = vld [vmem:[%s1 + $0x178] sm:$0xff]
        %v572 = vld [vmem:[%s1 + $0x180] sm:$0xff]
        %v573 = vld [vmem:[%s1 + $0x188] sm:$0xff]
        %v574 = vld [vmem:[%s1 + $0x190] sm:$0xff]
        %v575 = vld [vmem:[%s1 + $0x198] sm:$0xff]
        %v576 = vld [vmem:[%s1 + $0x1a0] sm:$0xff]
        %v577 = vld [vmem:[%s1 + $0x1a8] sm:$0xff]
        %v578 = vld [vmem:[%s1 + $0x1b0] sm:$0xff]
        %v579 = vld [vmem:[%s1 + $0x1b8] sm:$0xff]
        %v580 = vld [vmem:[%s1 + $0x1c0] sm:$0xff]
        %v581 = vld [vmem:[%s1 + $0x1c8] sm:$0xff]
        %v582 = vld [vmem:[%s1 + $0x1d0] sm:$0xff]
        %v583 = vld [vmem:[%s1 + $0x1d8] sm:$0xff]
        %v584 = vld [vmem:[%s1 + $0x1e0] sm:$0xff]
        %v585 = vld [vmem:[%s1 + $0x1e8] sm:$0xff]
        %v586 = vld [vmem:[%s1 + $0x1f0] sm:$0xff]
        %v587 = vld [vmem:[%s1 + $0x1f8] sm:$0xff]
        %v588 = vld [vmem:[%s1 + $0x200] sm:$0xff]
        %v589 = vld [vmem:[%s1 + $0x208] sm:$0xff]
        %v590 = vld [vmem:[%s1 + $0x210] sm:$0xff]
        %v591 = vld [vmem:[%s1 + $0x218] sm:$0xff]
        %v592 = vld [vmem:[%s1 + $0x220] sm:$0xff]
        %v593 = vld [vmem:[%s1 + $0x228] sm:$0xff]
        %v594 = vld [vmem:[%s1 + $0x230] sm:$0xff]
        %v595 = vld [vmem:[%s1 + $0x238] sm:$0xff]
        %v596 = vld [vmem:[%s1 + $0x240] sm:$0xff]
        %v597 = vld [vmem:[%s1 + $0x248] sm:$0xff]
        %v598 = vld [vmem:[%s1 + $0x250] sm:$0xff]
        %v599 = vld [vmem:[%s1 + $0x258] sm:$0xff]
        %v600 = vld [vmem:[%s1 + $0x260] sm:$0xff]
        %v601 = vld [vmem:[%s1 + $0x268] sm:$0xff]
        %v602 = vld [vmem:[%s1 + $0x270] sm:$0xff]
        %v603 = vld [vmem:[%s1 + $0x278] sm:$0xff]
        %v604 = vld [vmem:[%s1 + $0x280] sm:$0xff]
        %v605 = vld [vmem:[%s1 + $0x288] sm:$0xff]
        %v606 = vld [vmem:[%s1 + $0x290] sm:$0xff]
        %v607 = vld [vmem:[%s1 + $0x298] sm:$0xff]
        %v608 = vld [vmem:[%s1 + $0x2a0] sm:$0xff]
        %v609 = vld [vmem:[%s1 + $0x2a8] sm:$0xff]
        %v610 = vld [vmem:[%s1 + $0x2b0] sm:$0xff]
        %v611 = vld [vmem:[%s1 + $0x2b8] sm:$0xff]
        %v612 = vld [vmem:[%s1 + $0x2c0] sm:$0xff]
        %v613 = vld [vmem:[%s1 + $0x2c8] sm:$0xff]
        %v614 = vld [vmem:[%s1 + $0x2d0] sm:$0xff]
        %v615 = vld [vmem:[%s1 + $0x2d8] sm:$0xff]
        %v616 = vld [vmem:[%s1 + $0x2e0] sm:$0xff]
        %v617 = vld [vmem:[%s1 + $0x2e8] sm:$0xff]
        %v618 = vld [vmem:[%s1 + $0x2f0] sm:$0xff]
        %v619 = vld [vmem:[%s1 + $0x2f8] sm:$0xff]
        %v620 = vld [vmem:[%s2] sm:$0x3]
        %v622 = vlaneseq
        %v623 = vshrl.u32 %v622, 7
        %v624 = vsub.s32 0, %v623
        %v625 = vrot.slane %v620, %v624
        %v626 = vlaneseq
        %v627 = vshrl.u32 %v626, 7
        %v628 = vsub.s32 1, %v627
        %v629 = vrot.slane %v620, %v628
        %632 = vmatprep.subr.mxu0 %v525
        %633 = vmatpush1.msra.mxu0 %v524
        %634 = vmatprep.subr.mxu0 %v527
        %635 = vmatpush1.msra.mxu0 %v526
        %636 = vmatprep.subr.mxu0 %v529
        %637 = vmatpush1.msra.mxu0 %v528
        %638 = vmatprep.subr.mxu0 %v531
        %639 = vmatpush1.msra.mxu0 %v530
        %640 = vmatprep.subr.mxu0 %v533
        %641 = vmatpush1.msra.mxu0 %v532
        %642 = vmatprep.subr.mxu0 %v535
        %643 = vmatpush1.msra.mxu0 %v534
        %644 = vmatprep.subr.mxu0 %v537
        %645 = vmatpush1.msra.mxu0 %v536
        %646 = vmatprep.subr.mxu0 %v539
        %647 = vmatpush1.msra.mxu0 %v538
        %648 = vmatprep.subr.mxu0 %v541
        %649 = vmatpush1.msra.mxu0 %v540
        %650 = vmatprep.subr.mxu0 %v543
        %651 = vmatpush1.msra.mxu0 %v542
        %652 = vmatprep.subr.mxu0 %v545
        %653 = vmatpush1.msra.mxu0 %v544
        %654 = vmatprep.subr.mxu0 %v547
        %655 = vmatpush1.msra.mxu0 %v546
        %656 = vmatprep.subr.mxu0 %v549
        %657 = vmatpush1.msra.mxu0 %v548
        %658 = vmatprep.subr.mxu0 %v551
        %659 = vmatpush1.msra.mxu0 %v550
        %660 = vmatprep.subr.mxu0 %v553
        %661 = vmatpush1.msra.mxu0 %v552
        %662 = vmatprep.subr.mxu0 %v555
        %663 = vmatpush1.msra.mxu0 %v554
        %664 = vmatprep.subr.mxu0 %v557
        %665 = vmatpush1.msra.mxu0 %v556
        %666 = vmatprep.subr.mxu0 %v559
        %667 = vmatpush1.msra.mxu0 %v558
        %668 = vmatprep.subr.mxu0 %v561
        %669 = vmatpush1.msra.mxu0 %v560
        %670 = vmatprep.subr.mxu0 %v563
        %671 = vmatpush1.msra.mxu0 %v562
        %672 = vmatprep.subr.mxu0 %v565
        %673 = vmatpush1.msra.mxu0 %v564
        %674 = vmatprep.subr.mxu0 %v567
        %675 = vmatpush1.msra.mxu0 %v566
        %676 = vmatprep.subr.mxu0 %v569
        %677 = vmatpush1.msra.mxu0 %v568
        %678 = vmatprep.subr.mxu0 %v571
        %679 = vmatpush1.msra.mxu0 %v570
        %680 = vmatprep.subr.mxu0 %v573
        %681 = vmatpush1.msra.mxu0 %v572
        %682 = vmatprep.subr.mxu0 %v575
        %683 = vmatpush1.msra.mxu0 %v574
        %684 = vmatprep.subr.mxu0 %v577
        %685 = vmatpush1.msra.mxu0 %v576
        %686 = vmatprep.subr.mxu0 %v579
        %687 = vmatpush1.msra.mxu0 %v578
        %688 = vmatprep.subr.mxu0 %v581
        %689 = vmatpush1.msra.mxu0 %v580
        %690 = vmatprep.subr.mxu0 %v583
        %691 = vmatpush1.msra.mxu0 %v582
        %692 = vmatprep.subr.mxu0 %v585
        %693 = vmatpush1.msra.mxu0 %v584
        %694 = vmatprep.subr.mxu0 %v587
        %695 = vmatpush1.msra.mxu0 %v586
        %696 = vmatprep.mubr.f32.mxu0 %v503
        %697 = vmatmul.mubr.f32.gmra.mrb[0].mxu0 %v492
        %v698 = vpop.f32.mrb[0].mxu0
        %v699 = vadd.f32 %v625, %v698
        %v700 = vpop.f32.mrb[0].mxu0
        %v701 = vadd.f32 %v629, %v700
        %702 = vmatprep.mubr.f32.mxu0 %v505
        %703 = vmatmul.mubr.f32.gmra.mrb[0].mxu0 %v493
        %v704 = vpop.f32.mrb[0].mxu0
        %v705 = vadd.f32 %v625, %v704
        %v706 = vpop.f32.mrb[0].mxu0
        %v707 = vadd.f32 %v629, %v706
        %708 = vmatprep.mubr.f32.mxu0 %v507
        %709 = vmatmul.mubr.f32.gmra.mrb[0].mxu0 %v494
        %v710 = vpop.f32.mrb[0].mxu0
        %v711 = vadd.f32 %v625, %v710
        %v712 = vpop.f32.mrb[0].mxu0
        %v713 = vadd.f32 %v629, %v712
        %714 = vmatprep.mubr.f32.mxu0 %v506
        %715 = vmatmul.mubr.f32.gmra.mrb[0].mxu0 %v495
        %v716 = vpop.f32.mrb[0].mxu0
        %v717 = vadd.f32 %v625, %v716
        %v718 = vpop.f32.mrb[0].mxu0
        %v719 = vadd.f32 %v629, %v718
        %720 = vdwg.mxu0
        %721 = vmatprep.subr.mxu0 %v589
        %722 = vmatpush1.msra.mxu0 %v588
        %723 = vmatprep.subr.mxu0 %v591
        %724 = vmatpush1.msra.mxu0 %v590
        %725 = vmatprep.subr.mxu0 %v593
        %726 = vmatpush1.msra.mxu0 %v592
        %727 = vmatprep.subr.mxu0 %v595
        %728 = vmatpush1.msra.mxu0 %v594
        %729 = vmatprep.subr.mxu0 %v597
        %730 = vmatpush1.msra.mxu0 %v596
        %731 = vmatprep.subr.mxu0 %v599
        %732 = vmatpush1.msra.mxu0 %v598
        %733 = vmatprep.subr.mxu0 %v601
        %734 = vmatpush1.msra.mxu0 %v600
        %735 = vmatprep.subr.mxu0 %v603
        %736 = vmatpush1.msra.mxu0 %v602
        %737 = vmatprep.subr.mxu0 %v605
        %738 = vmatpush1.msra.mxu0 %v604
        %739 = vmatprep.subr.mxu0 %v607
        %740 = vmatpush1.msra.mxu0 %v606
        %741 = vmatprep.subr.mxu0 %v609
        %742 = vmatpush1.msra.mxu0 %v608
        %743 = vmatprep.subr.mxu0 %v611
        %744 = vmatpush1.msra.mxu0 %v610
        %745 = vmatprep.subr.mxu0 %v613
        %746 = vmatpush1.msra.mxu0 %v612
        %747 = vmatprep.subr.mxu0 %v615
        %748 = vmatpush1.msra.mxu0 %v614
        %749 = vmatprep.subr.mxu0 %v617
        %750 = vmatpush1.msra.mxu0 %v616
        %751 = vmatprep.subr.mxu0 %v619
        %752 = vmatpush1.msra.mxu0 %v618
        %753 = vmatprep.subr.mxu0 0.0
        %754 = vmatpush1.msra.mxu0 0.0
        %755 = vmatprep.subr.mxu0 0.0
        %756 = vmatpush1.msra.mxu0 0.0
        %757 = vmatprep.subr.mxu0 0.0
        %758 = vmatpush1.msra.mxu0 0.0
        %759 = vmatprep.subr.mxu0 0.0
        %760 = vmatpush1.msra.mxu0 0.0
        %761 = vmatprep.subr.mxu0 0.0
        %762 = vmatpush1.msra.mxu0 0.0
        %763 = vmatprep.subr.mxu0 0.0
        %764 = vmatpush1.msra.mxu0 0.0
        %765 = vmatprep.subr.mxu0 0.0
        %766 = vmatpush1.msra.mxu0 0.0
        %767 = vmatprep.subr.mxu0 0.0
        %768 = vmatpush1.msra.mxu0 0.0
        %769 = vmatprep.subr.mxu0 0.0
        %770 = vmatpush1.msra.mxu0 0.0
        %771 = vmatprep.subr.mxu0 0.0
        %772 = vmatpush1.msra.mxu0 0.0
        %773 = vmatprep.subr.mxu0 0.0
        %774 = vmatpush1.msra.mxu0 0.0
        %775 = vmatprep.subr.mxu0 0.0
        %776 = vmatpush1.msra.mxu0 0.0
        %777 = vmatprep.subr.mxu0 0.0
        %778 = vmatpush1.msra.mxu0 0.0
        %779 = vmatprep.subr.mxu0 0.0
        %780 = vmatpush1.msra.mxu0 0.0
        %781 = vmatprep.subr.mxu0 0.0
        %782 = vmatpush1.msra.mxu0 0.0
        %783 = vmatprep.subr.mxu0 0.0
        %784 = vmatpush1.msra.mxu0 0.0
        %785 = vmatprep.mubr.f32.mxu0 0.0
        %786 = vmatmul.mubr.f32.gmra.mrb[0].mxu0 %v515
        %v787 = vpop.f32.mrb[0].mxu0
        %v788 = vadd.f32 %v699, %v787
        %v789 = vpop.f32.mrb[0].mxu0
        %v790 = vadd.f32 %v701, %v789
        %791 = vmatprep.mubr.f32.mxu0 0.0
        %792 = vmatmul.mubr.f32.gmra.mrb[0].mxu0 %v517
        %v793 = vpop.f32.mrb[0].mxu0
        %v794 = vadd.f32 %v705, %v793
        %v795 = vpop.f32.mrb[0].mxu0
        %v796 = vadd.f32 %v707, %v795
        %797 = vmatprep.mubr.f32.mxu0 0.0
        %798 = vmatmul.mubr.f32.gmra.mrb[0].mxu0 %v519
        %v799 = vpop.f32.mrb[0].mxu0
        %v800 = vadd.f32 %v711, %v799
        %v801 = vpop.f32.mrb[0].mxu0
        %v802 = vadd.f32 %v713, %v801
        %803 = vmatprep.mubr.f32.mxu0 0.0
        %804 = vmatmul.mubr.f32.gmra.mrb[0].mxu0 %v518
        %v805 = vpop.f32.mrb[0].mxu0
        %v806 = vadd.f32 %v717, %v805
        %v807 = vpop.f32.mrb[0].mxu0
        %v808 = vadd.f32 %v719, %v807
        %809 = vdwg.mxu0
        %v810 = vmax.f32 %v788, 0.0
        %v811 = vmax.f32 %v790, 0.0
        %v812 = vmax.f32 %v794, 0.0
        %v813 = vmax.f32 %v796, 0.0
        %v814 = vmax.f32 %v800, 0.0
        %v815 = vmax.f32 %v802, 0.0
        %v816 = vmax.f32 %v806, 0.0
        %v817 = vmax.f32 %v808, 0.0
        %v818 = vld [vmem:[%s3] sm:$0xff]
        %v819 = vld [vmem:[%s3 + $0x8] sm:$0xff]
        %v820 = vld [vmem:[%s3 + $0x10] sm:$0xff]
        %v821 = vld [vmem:[%s3 + $0x18] sm:$0xff]
        %vm822 = vcmask 211968
        %v824 = vsel %vm822, %v818, 0
        %v827 = vsel %vm822, %v819, 0
        %v830 = vsel %vm822, %v820, 0
        %v833 = vsel %vm822, %v821, 0
        %vm835 = vcmask 1041408
        %v837 = vsel %vm835, %v816, 0
        %v840 = vsel %vm835, %v817, 0
        %842 = vmatprep.subr.mxu0 %v811
        %843 = vmatpush1.msra.mxu0 %v810
        %844 = vmatprep.subr.mxu0 %v813
        %845 = vmatpush1.msra.mxu0 %v812
        %846 = vmatprep.subr.mxu0 %v815
        %847 = vmatpush1.msra.mxu0 %v814
        %848 = vmatprep.subr.mxu0 %v840
        %849 = vmatpush1.msra.mxu0 %v837
        %850 = vmatprep.subr.mxu0 0.0
        %851 = vmatpush1.msra.mxu0 0.0
        %852 = vmatprep.subr.mxu0 0.0
        %853 = vmatpush1.msra.mxu0 0.0
        %854 = vmatprep.subr.mxu0 0.0
        %855 = vmatpush1.msra.mxu0 0.0
        %856 = vmatprep.subr.mxu0 0.0
        %857 = vmatpush1.msra.mxu0 0.0
        %858 = vmatprep.subr.mxu0 0.0
        %859 = vmatpush1.msra.mxu0 0.0
        %860 = vmatprep.subr.mxu0 0.0
        %861 = vmatpush1.msra.mxu0 0.0
        %862 = vmatprep.subr.mxu0 0.0
        %863 = vmatpush1.msra.mxu0 0.0
        %864 = vmatprep.subr.mxu0 0.0
        %865 = vmatpush1.msra.mxu0 0.0
        %866 = vmatprep.subr.mxu0 0.0
        %867 = vmatpush1.msra.mxu0 0.0
        %868 = vmatprep.subr.mxu0 0.0
        %869 = vmatpush1.msra.mxu0 0.0
        %870 = vmatprep.subr.mxu0 0.0
        %871 = vmatpush1.msra.mxu0 0.0
        %872 = vmatprep.subr.mxu0 0.0
        %873 = vmatpush1.msra.mxu0 0.0
        %874 = vmatprep.subr.mxu0 0.0
        %875 = vmatpush1.msra.mxu0 0.0
        %876 = vmatprep.subr.mxu0 0.0
        %877 = vmatpush1.msra.mxu0 0.0
        %878 = vmatprep.subr.mxu0 0.0
        %879 = vmatpush1.msra.mxu0 0.0
        %880 = vmatprep.subr.mxu0 0.0
        %881 = vmatpush1.msra.mxu0 0.0
        %882 = vmatprep.subr.mxu0 0.0
        %883 = vmatpush1.msra.mxu0 0.0
        %884 = vmatprep.subr.mxu0 0.0
        %885 = vmatpush1.msra.mxu0 0.0
        %886 = vmatprep.subr.mxu0 0.0
        %887 = vmatpush1.msra.mxu0 0.0
        %888 = vmatprep.subr.mxu0 0.0
        %889 = vmatpush1.msra.mxu0 0.0
        %890 = vmatprep.subr.mxu0 0.0
        %891 = vmatpush1.msra.mxu0 0.0
        %892 = vmatprep.subr.mxu0 0.0
        %893 = vmatpush1.msra.mxu0 0.0
        %894 = vmatprep.subr.mxu0 0.0
        %895 = vmatpush1.msra.mxu0 0.0
        %896 = vmatprep.subr.mxu0 0.0
        %897 = vmatpush1.msra.mxu0 0.0
        %898 = vmatprep.subr.mxu0 0.0
        %899 = vmatpush1.msra.mxu0 0.0
        %900 = vmatprep.subr.mxu0 0.0
        %901 = vmatpush1.msra.mxu0 0.0
        %902 = vmatprep.subr.mxu0 0.0
        %903 = vmatpush1.msra.mxu0 0.0
        %904 = vmatprep.subr.mxu0 0.0
        %905 = vmatpush1.msra.mxu0 0.0
        %906 = vmatprep.mubr.f32.mxu0 0.0
        %907 = vmatmul.mubr.f32.gmra.mrb[0].mxu0 %v824
        %v908 = vpop.f32.mrb[0].mxu0
        %v909 = vadd.f32 0.0, %v908
        %v910 = vpop.f32.mrb[0].mxu0
        %v911 = vadd.f32 0.0, %v910
        %912 = vmatprep.mubr.f32.mxu0 0.0
        %913 = vmatmul.mubr.f32.gmra.mrb[0].mxu0 %v827
        %v914 = vpop.f32.mrb[0].mxu0
        %v915 = vadd.f32 0.0, %v914
        %v916 = vpop.f32.mrb[0].mxu0
        %v917 = vadd.f32 0.0, %v916
        %918 = vmatprep.mubr.f32.mxu0 0.0
        %919 = vmatmul.mubr.f32.gmra.mrb[0].mxu0 %v830
        %v920 = vpop.f32.mrb[0].mxu0
        %v921 = vadd.f32 0.0, %v920
        %v922 = vpop.f32.mrb[0].mxu0
        %v923 = vadd.f32 0.0, %v922
        %924 = vmatprep.mubr.f32.mxu0 0.0
        %925 = vmatmul.mubr.f32.gmra.mrb[0].mxu0 %v833
        %v926 = vpop.f32.mrb[0].mxu0
        %v927 = vadd.f32 0.0, %v926
        %v928 = vpop.f32.mrb[0].mxu0
        %v929 = vadd.f32 0.0, %v928
        %930 = vdwg.mxu0
        %v931 = vmax.f32 %v909, %v921
        %v932 = vmax.f32 %v911, %v923
        %v933 = vmax.f32 %v915, %v927
        %v934 = vmax.f32 %v917, %v929
        %v935 = vld [vmem:[%s4] sm:$0xff]
        %v936 = vld [vmem:[%s4 + $0x8] sm:$0xff]
        %v937 = vld [vmem:[%s4 + $0x10] sm:$0xff]
        %v938 = vld [vmem:[%s4 + $0x18] sm:$0xff]
        %v939 = vld [vmem:[%s4 + $0x20] sm:$0xff]
        %v940 = vld [vmem:[%s4 + $0x28] sm:$0xff]
        %v941 = vld [vmem:[%s4 + $0x30] sm:$0xff]
        %v942 = vld [vmem:[%s4 + $0x38] sm:$0xff]
        %v943 = vld [vmem:[%s4 + $0x40] sm:$0xff]
        %v944 = vld [vmem:[%s4 + $0x48] sm:$0xff]
        %v945 = vld [vmem:[%s4 + $0x50] sm:$0xff]
        %v946 = vld [vmem:[%s4 + $0x58] sm:$0xff]
        %v947 = vld [vmem:[%s4 + $0x60] sm:$0xff]
        %v948 = vld [vmem:[%s4 + $0x68] sm:$0xff]
        %v949 = vld [vmem:[%s4 + $0x70] sm:$0xff]
        %v950 = vld [vmem:[%s4 + $0x78] sm:$0xff]
        %v951 = vld [vmem:[%s4 + $0x80] sm:$0xff]
        %v952 = vld [vmem:[%s4 + $0x88] sm:$0xff]
        %v953 = vld [vmem:[%s4 + $0x90] sm:$0xff]
        %v954 = vld [vmem:[%s4 + $0x98] sm:$0xff]
        %v955 = vld [vmem:[%s4 + $0xa0] sm:$0xff]
        %v956 = vld [vmem:[%s4 + $0xa8] sm:$0xff]
        %v957 = vld [vmem:[%s4 + $0xb0] sm:$0xff]
        %v958 = vld [vmem:[%s4 + $0xb8] sm:$0xff]
        %v959 = vld [vmem:[%s4 + $0xc0] sm:$0xff]
        %v960 = vld [vmem:[%s4 + $0xc8] sm:$0xff]
        %v961 = vld [vmem:[%s4 + $0xd0] sm:$0xff]
        %v962 = vld [vmem:[%s4 + $0xd8] sm:$0xff]
        %v963 = vld [vmem:[%s4 + $0xe0] sm:$0xff]
        %v964 = vld [vmem:[%s4 + $0xe8] sm:$0xff]
        %v965 = vld [vmem:[%s4 + $0xf0] sm:$0xff]
        %v966 = vld [vmem:[%s4 + $0xf8] sm:$0xff]
        %v967 = vld [vmem:[%s4 + $0x100] sm:$0xff]
        %v968 = vld [vmem:[%s4 + $0x108] sm:$0xff]
        %v969 = vld [vmem:[%s4 + $0x110] sm:$0xff]
        %v970 = vld [vmem:[%s4 + $0x118] sm:$0xff]
        %v971 = vld [vmem:[%s4 + $0x120] sm:$0xff]
        %v972 = vld [vmem:[%s4 + $0x128] sm:$0xff]
        %v973 = vld [vmem:[%s4 + $0x130] sm:$0xf]
        %v974 = vld [vmem:[%s4 + $0x138] sm:$0xf]
        %vm975 = vcmask 228352
        %v977 = vsel %vm975, %v932, 0
        %v980 = vsel %vm975, %v934, 0
        %vm982 = vcmask 1043456
        %v984 = vsel %vm982, %v973, 0
        %v987 = vsel %vm982, %v974, 0
        %989 = vmatprep.subr.mxu0 %v936
        %990 = vmatpush1.msra.mxu0 %v935
        %991 = vmatprep.subr.mxu0 %v938
        %992 = vmatpush1.msra.mxu0 %v937
        %993 = vmatprep.subr.mxu0 %v940
        %994 = vmatpush1.msra.mxu0 %v939
        %995 = vmatprep.subr.mxu0 %v942
        %996 = vmatpush1.msra.mxu0 %v941
        %997 = vmatprep.subr.mxu0 %v944
        %998 = vmatpush1.msra.mxu0 %v943
        %999 = vmatprep.subr.mxu0 %v946
        %1000 = vmatpush1.msra.mxu0 %v945
        %1001 = vmatprep.subr.mxu0 %v948
        %1002 = vmatpush1.msra.mxu0 %v947
        %1003 = vmatprep.subr.mxu0 %v950
        %1004 = vmatpush1.msra.mxu0 %v949
        %1005 = vmatprep.subr.mxu0 %v952
        %1006 = vmatpush1.msra.mxu0 %v951
        %1007 = vmatprep.subr.mxu0 %v954
        %1008 = vmatpush1.msra.mxu0 %v953
        %1009 = vmatprep.subr.mxu0 %v956
        %1010 = vmatpush1.msra.mxu0 %v955
        %1011 = vmatprep.subr.mxu0 %v958
        %1012 = vmatpush1.msra.mxu0 %v957
        %1013 = vmatprep.subr.mxu0 %v960
        %1014 = vmatpush1.msra.mxu0 %v959
        %1015 = vmatprep.subr.mxu0 %v962
        %1016 = vmatpush1.msra.mxu0 %v961
        %1017 = vmatprep.subr.mxu0 %v964
        %1018 = vmatpush1.msra.mxu0 %v963
        %1019 = vmatprep.subr.mxu0 %v966
        %1020 = vmatpush1.msra.mxu0 %v965
        %1021 = vmatprep.subr.mxu0 %v968
        %1022 = vmatpush1.msra.mxu0 %v967
        %1023 = vmatprep.subr.mxu0 %v970
        %1024 = vmatpush1.msra.mxu0 %v969
        %1025 = vmatprep.subr.mxu0 %v972
        %1026 = vmatpush1.msra.mxu0 %v971
        %1027 = vmatprep.subr.mxu0 %v987
        %1028 = vmatpush1.msra.mxu0 %v984
        %1029 = vmatprep.subr.mxu0 0.0
        %1030 = vmatpush1.msra.mxu0 0.0
        %1031 = vmatprep.subr.mxu0 0.0
        %1032 = vmatpush1.msra.mxu0 0.0
        %1033 = vmatprep.subr.mxu0 0.0
        %1034 = vmatpush1.msra.mxu0 0.0
        %1035 = vmatprep.subr.mxu0 0.0
        %1036 = vmatpush1.msra.mxu0 0.0
        %1037 = vmatprep.subr.mxu0 0.0
        %1038 = vmatpush1.msra.mxu0 0.0
        %1039 = vmatprep.subr.mxu0 0.0
        %1040 = vmatpush1.msra.mxu0 0.0
        %1041 = vmatprep.subr.mxu0 0.0
        %1042 = vmatpush1.msra.mxu0 0.0
        %1043 = vmatprep.subr.mxu0 0.0
        %1044 = vmatpush1.msra.mxu0 0.0
        %1045 = vmatprep.subr.mxu0 0.0
        %1046 = vmatpush1.msra.mxu0 0.0
        %1047 = vmatprep.subr.mxu0 0.0
        %1048 = vmatpush1.msra.mxu0 0.0
        %1049 = vmatprep.subr.mxu0 0.0
        %1050 = vmatpush1.msra.mxu0 0.0
        %1051 = vmatprep.subr.mxu0 0.0
        %1052 = vmatpush1.msra.mxu0 0.0
        %1053 = vmatprep.mubr.f32.mxu0 %v977
        %1054 = vmatmul.mubr.f32.gmra.mrb[0].mxu0 %v931
        %v1055 = vpop.f32.mrb[0].mxu0
        %v1056 = vadd.f32 0.0, %v1055
        %v1057 = vpop.f32.mrb[0].mxu0
        %v1058 = vadd.f32 0.0, %v1057
        %1059 = vmatprep.mubr.f32.mxu0 %v980
        %1060 = vmatmul.mubr.f32.gmra.mrb[0].mxu0 %v933
        %v1061 = vpop.f32.mrb[0].mxu0
        %v1062 = vadd.f32 0.0, %v1061
        %v1063 = vpop.f32.mrb[0].mxu0
        %v1064 = vadd.f32 0.0, %v1063
        %1065 = vdwg.mxu0
        %v1066 = vmax.f32 %v1056, %v1058
        %v1067 = vmax.f32 %v1062, %v1064
        %v1070 = vrot.slane %v1066, 1
        %v1071 = vrot.slane %v1067, 1
        %v1072 = vsel %vm500, %v1070, %v1071
        %v1075 = vrot.slane %v1066, 2
        %v1076 = vrot.slane %v1067, 2
        %v1077 = vsel %vm512, %v1075, %v1076
        %v1080 = vld [vmem:[%s5] sm:$0xff]
        %v1081 = vld [vmem:[%s5 + $0x8] sm:$0xff]
        %v1082 = vld [vmem:[%s5 + $0x10] sm:$0xff]
        %v1083 = vld [vmem:[%s5 + $0x18] sm:$0xff]
        %v1084 = vld [vmem:[%s5 + $0x20] sm:$0xff]
        %v1085 = vld [vmem:[%s5 + $0x28] sm:$0xff]
        %v1086 = vld [vmem:[%s5 + $0x30] sm:$0xff]
        %v1087 = vld [vmem:[%s5 + $0x38] sm:$0xff]
        %v1088 = vld [vmem:[%s5 + $0x40] sm:$0xff]
        %v1089 = vld [vmem:[%s5 + $0x48] sm:$0xff]
        %v1090 = vld [vmem:[%s5 + $0x50] sm:$0xff]
        %v1091 = vld [vmem:[%s5 + $0x58] sm:$0xff]
        %v1092 = vld [vmem:[%s5 + $0x60] sm:$0xff]
        %v1093 = vld [vmem:[%s5 + $0x68] sm:$0xff]
        %v1094 = vld [vmem:[%s5 + $0x70] sm:$0xff]
        %v1095 = vld [vmem:[%s5 + $0x78] sm:$0xff]
        %v1096 = vld [vmem:[%s5 + $0x80] sm:$0xff]
        %v1097 = vld [vmem:[%s5 + $0x88] sm:$0xff]
        %v1098 = vld [vmem:[%s5 + $0x90] sm:$0xff]
        %v1099 = vld [vmem:[%s5 + $0x98] sm:$0xff]
        %v1100 = vld [vmem:[%s5 + $0xa0] sm:$0xff]
        %v1101 = vld [vmem:[%s5 + $0xa8] sm:$0xff]
        %v1102 = vld [vmem:[%s5 + $0xb0] sm:$0xff]
        %v1103 = vld [vmem:[%s5 + $0xb8] sm:$0xff]
        %v1104 = vld [vmem:[%s5 + $0xc0] sm:$0xff]
        %v1105 = vld [vmem:[%s5 + $0xc8] sm:$0xff]
        %v1106 = vld [vmem:[%s5 + $0xd0] sm:$0xff]
        %v1107 = vld [vmem:[%s5 + $0xd8] sm:$0xff]
        %v1108 = vld [vmem:[%s5 + $0xe0] sm:$0xff]
        %v1109 = vld [vmem:[%s5 + $0xe8] sm:$0xff]
        %v1110 = vld [vmem:[%s5 + $0xf0] sm:$0xff]
        %v1111 = vld [vmem:[%s5 + $0xf8] sm:$0xff]
        %v1112 = vld [vmem:[%s5 + $0x100] sm:$0xff]
        %v1113 = vld [vmem:[%s5 + $0x108] sm:$0xff]
        %v1114 = vld [vmem:[%s5 + $0x110] sm:$0xff]
        %v1115 = vld [vmem:[%s5 + $0x118] sm:$0xff]
        %v1116 = vld [vmem:[%s5 + $0x120] sm:$0xff]
        %v1117 = vld [vmem:[%s5 + $0x128] sm:$0xff]
        %v1118 = vld [vmem:[%s5 + $0x130] sm:$0xff]
        %v1119 = vld [vmem:[%s5 + $0x138] sm:$0xff]
        %v1120 = vld [vmem:[%s5 + $0x140] sm:$0xff]
        %v1121 = vld [vmem:[%s5 + $0x148] sm:$0xff]
        %v1122 = vld [vmem:[%s5 + $0x150] sm:$0xff]
        %v1123 = vld [vmem:[%s5 + $0x158] sm:$0xff]
        %v1124 = vld [vmem:[%s5 + $0x160] sm:$0xff]
        %v1125 = vld [vmem:[%s5 + $0x168] sm:$0xff]
        %v1126 = vld [vmem:[%s5 + $0x170] sm:$0xff]
        %v1127 = vld [vmem:[%s5 + $0x178] sm:$0xff]
        %v1128 = vld [vmem:[%s5 + $0x180] sm:$0xff]
        %v1129 = vld [vmem:[%s5 + $0x188] sm:$0xff]
        %v1130 = vld [vmem:[%s5 + $0x190] sm:$0xff]
        %v1131 = vld [vmem:[%s5 + $0x198] sm:$0xff]
        %v1132 = vld [vmem:[%s5 + $0x1a0] sm:$0xff]
        %v1133 = vld [vmem:[%s5 + $0x1a8] sm:$0xff]
        %v1134 = vld [vmem:[%s5 + $0x1b0] sm:$0xff]
        %v1135 = vld [vmem:[%s5 + $0x1b8] sm:$0xff]
        %v1136 = vld [vmem:[%s5 + $0x1c0] sm:$0xff]
        %v1137 = vld [vmem:[%s5 + $0x1c8] sm:$0xff]
        %v1138 = vld [vmem:[%s5 + $0x1d0] sm:$0xff]
        %v1139 = vld [vmem:[%s5 + $0x1d8] sm:$0xff]
        %v1140 = vld [vmem:[%s5 + $0x1e0] sm:$0xff]
        %v1141 = vld [vmem:[%s5 + $0x1e8] sm:$0xff]
        %v1142 = vld [vmem:[%s5 + $0x1f0] sm:$0xff]
        %v1143 = vld [vmem:[%s5 + $0x1f8] sm:$0xff]
        %v1144 = vld [vmem:[%s5 + $0x200] sm:$0xff]
        %v1145 = vld [vmem:[%s5 + $0x208] sm:$0xff]
        %v1146 = vld [vmem:[%s5 + $0x210] sm:$0xff]
        %v1147 = vld [vmem:[%s5 + $0x218] sm:$0xff]
        %v1148 = vld [vmem:[%s5 + $0x220] sm:$0xff]
        %v1149 = vld [vmem:[%s5 + $0x228] sm:$0xff]
        %v1150 = vld [vmem:[%s5 + $0x230] sm:$0xff]
        %v1151 = vld [vmem:[%s5 + $0x238] sm:$0xff]
        %v1152 = vld [vmem:[%s5 + $0x240] sm:$0xff]
        %v1153 = vld [vmem:[%s5 + $0x248] sm:$0xff]
        %v1154 = vld [vmem:[%s5 + $0x250] sm:$0xff]
        %v1155 = vld [vmem:[%s5 + $0x258] sm:$0xff]
        %v1156 = vld [vmem:[%s5 + $0x260] sm:$0xff]
        %v1157 = vld [vmem:[%s5 + $0x268] sm:$0xff]
        %v1158 = vld [vmem:[%s5 + $0x270] sm:$0xff]
        %v1159 = vld [vmem:[%s5 + $0x278] sm:$0xff]
        %v1160 = vld [vmem:[%s5 + $0x280] sm:$0xff]
        %v1161 = vld [vmem:[%s5 + $0x288] sm:$0xff]
        %v1162 = vld [vmem:[%s5 + $0x290] sm:$0xff]
        %v1163 = vld [vmem:[%s5 + $0x298] sm:$0xff]
        %v1164 = vld [vmem:[%s5 + $0x2a0] sm:$0xff]
        %v1165 = vld [vmem:[%s5 + $0x2a8] sm:$0xff]
        %v1166 = vld [vmem:[%s5 + $0x2b0] sm:$0xff]
        %v1167 = vld [vmem:[%s5 + $0x2b8] sm:$0xff]
        %v1168 = vld [vmem:[%s5 + $0x2c0] sm:$0xff]
        %v1169 = vld [vmem:[%s5 + $0x2c8] sm:$0xff]
        %v1170 = vld [vmem:[%s5 + $0x2d0] sm:$0xff]
        %v1171 = vld [vmem:[%s5 + $0x2d8] sm:$0xff]
        %v1172 = vld [vmem:[%s5 + $0x2e0] sm:$0xff]
        %v1173 = vld [vmem:[%s5 + $0x2e8] sm:$0xff]
        %v1174 = vld [vmem:[%s5 + $0x2f0] sm:$0xff]
        %v1175 = vld [vmem:[%s5 + $0x2f8] sm:$0xff]
        %v1176 = vld [vmem:[%s6] sm:$0x3]
        %v1178 = vlaneseq
        %v1179 = vshrl.u32 %v1178, 7
        %v1180 = vsub.s32 0, %v1179
        %v1181 = vrot.slane %v1176, %v1180
        %v1182 = vlaneseq
        %v1183 = vshrl.u32 %v1182, 7
        %v1184 = vsub.s32 1, %v1183
        %v1185 = vrot.slane %v1176, %v1184
        %1188 = vmatprep.subr.mxu0 %v1081
        %1189 = vmatpush1.msra.mxu0 %v1080
        %1190 = vmatprep.subr.mxu0 %v1083
        %1191 = vmatpush1.msra.mxu0 %v1082
        %1192 = vmatprep.subr.mxu0 %v1085
        %1193 = vmatpush1.msra.mxu0 %v1084
        %1194 = vmatprep.subr.mxu0 %v1087
        %1195 = vmatpush1.msra.mxu0 %v1086
        %1196 = vmatprep.subr.mxu0 %v1089
        %1197 = vmatpush1.msra.mxu0 %v1088
        %1198 = vmatprep.subr.mxu0 %v1091
        %1199 = vmatpush1.msra.mxu0 %v1090
        %1200 = vmatprep.subr.mxu0 %v1093
        %1201 = vmatpush1.msra.mxu0 %v1092
        %1202 = vmatprep.subr.mxu0 %v1095
        %1203 = vmatpush1.msra.mxu0 %v1094
        %1204 = vmatprep.subr.mxu0 %v1097
        %1205 = vmatpush1.msra.mxu0 %v1096
        %1206 = vmatprep.subr.mxu0 %v1099
        %1207 = vmatpush1.msra.mxu0 %v1098
        %1208 = vmatprep.subr.mxu0 %v1101
        %1209 = vmatpush1.msra.mxu0 %v1100
        %1210 = vmatprep.subr.mxu0 %v1103
        %1211 = vmatpush1.msra.mxu0 %v1102
        %1212 = vmatprep.subr.mxu0 %v1105
        %1213 = vmatpush1.msra.mxu0 %v1104
        %1214 = vmatprep.subr.mxu0 %v1107
        %1215 = vmatpush1.msra.mxu0 %v1106
        %1216 = vmatprep.subr.mxu0 %v1109
        %1217 = vmatpush1.msra.mxu0 %v1108
        %1218 = vmatprep.subr.mxu0 %v1111
        %1219 = vmatpush1.msra.mxu0 %v1110
        %1220 = vmatprep.subr.mxu0 %v1113
        %1221 = vmatpush1.msra.mxu0 %v1112
        %1222 = vmatprep.subr.mxu0 %v1115
        %1223 = vmatpush1.msra.mxu0 %v1114
        %1224 = vmatprep.subr.mxu0 %v1117
        %1225 = vmatpush1.msra.mxu0 %v1116
        %1226 = vmatprep.subr.mxu0 %v1119
        %1227 = vmatpush1.msra.mxu0 %v1118
        %1228 = vmatprep.subr.mxu0 %v1121
        %1229 = vmatpush1.msra.mxu0 %v1120
        %1230 = vmatprep.subr.mxu0 %v1123
        %1231 = vmatpush1.msra.mxu0 %v1122
        %1232 = vmatprep.subr.mxu0 %v1125
        %1233 = vmatpush1.msra.mxu0 %v1124
        %1234 = vmatprep.subr.mxu0 %v1127
        %1235 = vmatpush1.msra.mxu0 %v1126
        %1236 = vmatprep.subr.mxu0 %v1129
        %1237 = vmatpush1.msra.mxu0 %v1128
        %1238 = vmatprep.subr.mxu0 %v1131
        %1239 = vmatpush1.msra.mxu0 %v1130
        %1240 = vmatprep.subr.mxu0 %v1133
        %1241 = vmatpush1.msra.mxu0 %v1132
        %1242 = vmatprep.subr.mxu0 %v1135
        %1243 = vmatpush1.msra.mxu0 %v1134
        %1244 = vmatprep.subr.mxu0 %v1137
        %1245 = vmatpush1.msra.mxu0 %v1136
        %1246 = vmatprep.subr.mxu0 %v1139
        %1247 = vmatpush1.msra.mxu0 %v1138
        %1248 = vmatprep.subr.mxu0 %v1141
        %1249 = vmatpush1.msra.mxu0 %v1140
        %1250 = vmatprep.subr.mxu0 %v1143
        %1251 = vmatpush1.msra.mxu0 %v1142
        %1252 = vmatprep.mubr.f32.mxu0 %v1072
        %1253 = vmatmul.mubr.f32.gmra.mrb[0].mxu0 %v1066
        %v1254 = vpop.f32.mrb[0].mxu0
        %v1255 = vadd.f32 %v1181, %v1254
        %v1256 = vpop.f32.mrb[0].mxu0
        %v1257 = vadd.f32 %v1185, %v1256
        %1258 = vmatprep.mubr.f32.mxu0 %v1071
        %1259 = vmatmul.mubr.f32.gmra.mrb[0].mxu0 %v1067
        %v1260 = vpop.f32.mrb[0].mxu0
        %v1261 = vadd.f32 %v1181, %v1260
        %v1262 = vpop.f32.mrb[0].mxu0
        %v1263 = vadd.f32 %v1185, %v1262
        %1264 = vdwg.mxu0
        %1265 = vmatprep.subr.mxu0 %v1145
        %1266 = vmatpush1.msra.mxu0 %v1144
        %1267 = vmatprep.subr.mxu0 %v1147
        %1268 = vmatpush1.msra.mxu0 %v1146
        %1269 = vmatprep.subr.mxu0 %v1149
        %1270 = vmatpush1.msra.mxu0 %v1148
        %1271 = vmatprep.subr.mxu0 %v1151
        %1272 = vmatpush1.msra.mxu0 %v1150
        %1273 = vmatprep.subr.mxu0 %v1153
        %1274 = vmatpush1.msra.mxu0 %v1152
        %1275 = vmatprep.subr.mxu0 %v1155
        %1276 = vmatpush1.msra.mxu0 %v1154
        %1277 = vmatprep.subr.mxu0 %v1157
        %1278 = vmatpush1.msra.mxu0 %v1156
        %1279 = vmatprep.subr.mxu0 %v1159
        %1280 = vmatpush1.msra.mxu0 %v1158
        %1281 = vmatprep.subr.mxu0 %v1161
        %1282 = vmatpush1.msra.mxu0 %v1160
        %1283 = vmatprep.subr.mxu0 %v1163
        %1284 = vmatpush1.msra.mxu0 %v1162
        %1285 = vmatprep.subr.mxu0 %v1165
        %1286 = vmatpush1.msra.mxu0 %v1164
        %1287 = vmatprep.subr.mxu0 %v1167
        %1288 = vmatpush1.msra.mxu0 %v1166
        %1289 = vmatprep.subr.mxu0 %v1169
        %1290 = vmatpush1.msra.mxu0 %v1168
        %1291 = vmatprep.subr.mxu0 %v1171
        %1292 = vmatpush1.msra.mxu0 %v1170
        %1293 = vmatprep.subr.mxu0 %v1173
        %1294 = vmatpush1.msra.mxu0 %v1172
        %1295 = vmatprep.subr.mxu0 %v1175
        %1296 = vmatpush1.msra.mxu0 %v1174
        %1297 = vmatprep.subr.mxu0 0.0
        %1298 = vmatpush1.msra.mxu0 0.0
        %1299 = vmatprep.subr.mxu0 0.0
        %1300 = vmatpush1.msra.mxu0 0.0
        %1301 = vmatprep.subr.mxu0 0.0
        %1302 = vmatpush1.msra.mxu0 0.0
        %1303 = vmatprep.subr.mxu0 0.0
        %1304 = vmatpush1.msra.mxu0 0.0
        %1305 = vmatprep.subr.mxu0 0.0
        %1306 = vmatpush1.msra.mxu0 0.0
        %1307 = vmatprep.subr.mxu0 0.0
        %1308 = vmatpush1.msra.mxu0 0.0
        %1309 = vmatprep.subr.mxu0 0.0
        %1310 = vmatpush1.msra.mxu0 0.0
        %1311 = vmatprep.subr.mxu0 0.0
        %1312 = vmatpush1.msra.mxu0 0.0
        %1313 = vmatprep.subr.mxu0 0.0
        %1314 = vmatpush1.msra.mxu0 0.0
        %1315 = vmatprep.subr.mxu0 0.0
        %1316 = vmatpush1.msra.mxu0 0.0
        %1317 = vmatprep.subr.mxu0 0.0
        %1318 = vmatpush1.msra.mxu0 0.0
        %1319 = vmatprep.subr.mxu0 0.0
        %1320 = vmatpush1.msra.mxu0 0.0
        %1321 = vmatprep.subr.mxu0 0.0
        %1322 = vmatpush1.msra.mxu0 0.0
        %1323 = vmatprep.subr.mxu0 0.0
        %1324 = vmatpush1.msra.mxu0 0.0
        %1325 = vmatprep.subr.mxu0 0.0
        %1326 = vmatpush1.msra.mxu0 0.0
        %1327 = vmatprep.subr.mxu0 0.0
        %1328 = vmatpush1.msra.mxu0 0.0
        %1329 = vmatprep.mubr.f32.mxu0 0.0
        %1330 = vmatmul.mubr.f32.gmra.mrb[0].mxu0 %v1077
        %v1331 = vpop.f32.mrb[0].mxu0
        %v1332 = vadd.f32 %v1255, %v1331
        %v1333 = vpop.f32.mrb[0].mxu0
        %v1334 = vadd.f32 %v1257, %v1333
        %1335 = vmatprep.mubr.f32.mxu0 0.0
        %1336 = vmatmul.mubr.f32.gmra.mrb[0].mxu0 %v1076
        %v1337 = vpop.f32.mrb[0].mxu0
        %v1338 = vadd.f32 %v1261, %v1337
        %v1339 = vpop.f32.mrb[0].mxu0
        %v1340 = vadd.f32 %v1263, %v1339
        %1341 = vdwg.mxu0
        %v1342 = vmax.f32 %v1332, 0.0
        %v1343 = vmax.f32 %v1334, 0.0
        %v1344 = vmax.f32 %v1338, 0.0
        %v1345 = vmax.f32 %v1340, 0.0
        %v1346 = vld [vmem:[%s7] sm:$0xff]
        %v1347 = vld [vmem:[%s7 + $0x8] sm:$0xff]
        %vm1348 = vcmask 89088
        %v1350 = vsel %vm1348, %v1346, 0
        %v1353 = vsel %vm1348, %v1347, 0
        %vm1355 = vcmask 1042432
        %v1357 = vsel %vm1355, %v1344, 0
        %v1360 = vsel %vm1355, %v1345, 0
        %1362 = vmatprep.subr.mxu0 %v1343
        %1363 = vmatpush1.msra.mxu0 %v1342
        %1364 = vmatprep.subr.mxu0 %v1360
        %1365 = vmatpush1.msra.mxu0 %v1357
        %1366 = vmatprep.subr.mxu0 0.0
        %1367 = vmatpush1.msra.mxu0 0.0
        %1368 = vmatprep.subr.mxu0 0.0
        %1369 = vmatpush1.msra.mxu0 0.0
        %1370 = vmatprep.subr.mxu0 0.0
        %1371 = vmatpush1.msra.mxu0 0.0
        %1372 = vmatprep.subr.mxu0 0.0
        %1373 = vmatpush1.msra.mxu0 0.0
        %1374 = vmatprep.subr.mxu0 0.0
        %1375 = vmatpush1.msra.mxu0 0.0
        %1376 = vmatprep.subr.mxu0 0.0
        %1377 = vmatpush1.msra.mxu0 0.0
        %1378 = vmatprep.subr.mxu0 0.0
        %1379 = vmatpush1.msra.mxu0 0.0
        %1380 = vmatprep.subr.mxu0 0.0
        %1381 = vmatpush1.msra.mxu0 0.0
        %1382 = vmatprep.subr.mxu0 0.0
        %1383 = vmatpush1.msra.mxu0 0.0
        %1384 = vmatprep.subr.mxu0 0.0
        %1385 = vmatpush1.msra.mxu0 0.0
        %1386 = vmatprep.subr.mxu0 0.0
        %1387 = vmatpush1.msra.mxu0 0.0
        %1388 = vmatprep.subr.mxu0 0.0
        %1389 = vmatpush1.msra.mxu0 0.0
        %1390 = vmatprep.subr.mxu0 0.0
        %1391 = vmatpush1.msra.mxu0 0.0
        %1392 = vmatprep.subr.mxu0 0.0
        %1393 = vmatpush1.msra.mxu0 0.0
        %1394 = vmatprep.subr.mxu0 0.0
        %1395 = vmatpush1.msra.mxu0 0.0
        %1396 = vmatprep.subr.mxu0 0.0
        %1397 = vmatpush1.msra.mxu0 0.0
        %1398 = vmatprep.subr.mxu0 0.0
        %1399 = vmatpush1.msra.mxu0 0.0
        %1400 = vmatprep.subr.mxu0 0.0
        %1401 = vmatpush1.msra.mxu0 0.0
        %1402 = vmatprep.subr.mxu0 0.0
        %1403 = vmatpush1.msra.mxu0 0.0
        %1404 = vmatprep.subr.mxu0 0.0
        %1405 = vmatpush1.msra.mxu0 0.0
        %1406 = vmatprep.subr.mxu0 0.0
        %1407 = vmatpush1.msra.mxu0 0.0
        %1408 = vmatprep.subr.mxu0 0.0
        %1409 = vmatpush1.msra.mxu0 0.0
        %1410 = vmatprep.subr.mxu0 0.0
        %1411 = vmatpush1.msra.mxu0 0.0
        %1412 = vmatprep.subr.mxu0 0.0
        %1413 = vmatpush1.msra.mxu0 0.0
        %1414 = vmatprep.subr.mxu0 0.0
        %1415 = vmatpush1.msra.mxu0 0.0
        %1416 = vmatprep.subr.mxu0 0.0
        %1417 = vmatpush1.msra.mxu0 0.0
        %1418 = vmatprep.subr.mxu0 0.0
        %1419 = vmatpush1.msra.mxu0 0.0
        %1420 = vmatprep.subr.mxu0 0.0
        %1421 = vmatpush1.msra.mxu0 0.0
        %1422 = vmatprep.subr.mxu0 0.0
        %1423 = vmatpush1.msra.mxu0 0.0
        %1424 = vmatprep.subr.mxu0 0.0
        %1425 = vmatpush1.msra.mxu0 0.0
        %1426 = vmatprep.mubr.f32.mxu0 0.0
        %1427 = vmatmul.mubr.f32.gmra.mrb[0].mxu0 %v1350
        %v1428 = vpop.f32.mrb[0].mxu0
        %v1429 = vadd.f32 0.0, %v1428
        %v1430 = vpop.f32.mrb[0].mxu0
        %v1431 = vadd.f32 0.0, %v1430
        %1432 = vmatprep.mubr.f32.mxu0 0.0
        %1433 = vmatmul.mubr.f32.gmra.mrb[0].mxu0 %v1353
        %v1434 = vpop.f32.mrb[0].mxu0
        %v1435 = vadd.f32 0.0, %v1434
        %v1436 = vpop.f32.mrb[0].mxu0
        %v1437 = vadd.f32 0.0, %v1436
        %1438 = vdwg.mxu0
        %v1439 = vmax.f32 %v1429, %v1435
        %v1440 = vmax.f32 %v1431, %v1437
        %v1441 = vld [vmem:[%s8] sm:$0xff]
        %v1442 = vld [vmem:[%s8 + $0x8] sm:$0xff]
        %v1443 = vld [vmem:[%s8 + $0x10] sm:$0xff]
        %v1444 = vld [vmem:[%s8 + $0x18] sm:$0xff]
        %v1445 = vld [vmem:[%s8 + $0x20] sm:$0xff]
        %v1446 = vld [vmem:[%s8 + $0x28] sm:$0xff]
        %v1447 = vld [vmem:[%s8 + $0x30] sm:$0xff]
        %v1448 = vld [vmem:[%s8 + $0x38] sm:$0xff]
        %v1449 = vld [vmem:[%s8 + $0x40] sm:$0xff]
        %v1450 = vld [vmem:[%s8 + $0x48] sm:$0xff]
        %v1451 = vld [vmem:[%s8 + $0x50] sm:$0xff]
        %v1452 = vld [vmem:[%s8 + $0x58] sm:$0xff]
        %v1453 = vld [vmem:[%s8 + $0x60] sm:$0xff]
        %v1454 = vld [vmem:[%s8 + $0x68] sm:$0xff]
        %v1455 = vld [vmem:[%s8 + $0x70] sm:$0xff]
        %v1456 = vld [vmem:[%s8 + $0x78] sm:$0xff]
        %v1457 = vld [vmem:[%s8 + $0x80] sm:$0xff]
        %v1458 = vld [vmem:[%s8 + $0x88] sm:$0xff]
        %v1459 = vld [vmem:[%s8 + $0x90] sm:$0xff]
        %v1460 = vld [vmem:[%s8 + $0x98] sm:$0xff]
        %v1461 = vld [vmem:[%s8 + $0xa0] sm:$0xff]
        %v1462 = vld [vmem:[%s8 + $0xa8] sm:$0xff]
        %v1463 = vld [vmem:[%s8 + $0xb0] sm:$0xff]
        %v1464 = vld [vmem:[%s8 + $0xb8] sm:$0xff]
        %v1465 = vld [vmem:[%s8 + $0xc0] sm:$0xff]
        %v1466 = vld [vmem:[%s8 + $0xc8] sm:$0xff]
        %v1467 = vld [vmem:[%s8 + $0xd0] sm:$0xff]
        %v1468 = vld [vmem:[%s8 + $0xd8] sm:$0xff]
        %v1469 = vld [vmem:[%s8 + $0xe0] sm:$0xff]
        %v1470 = vld [vmem:[%s8 + $0xe8] sm:$0xff]
        %v1471 = vld [vmem:[%s8 + $0xf0] sm:$0xff]
        %v1472 = vld [vmem:[%s8 + $0xf8] sm:$0xff]
        %v1473 = vld [vmem:[%s8 + $0x100] sm:$0xff]
        %v1474 = vld [vmem:[%s8 + $0x108] sm:$0xff]
        %v1475 = vld [vmem:[%s8 + $0x110] sm:$0xff]
        %v1476 = vld [vmem:[%s8 + $0x118] sm:$0xff]
        %v1477 = vld [vmem:[%s8 + $0x120] sm:$0xff]
        %v1478 = vld [vmem:[%s8 + $0x128] sm:$0xff]
        %v1479 = vld [vmem:[%s8 + $0x130] sm:$0xff]
        %v1480 = vld [vmem:[%s8 + $0x138] sm:$0xff]
        %v1481 = vld [vmem:[%s8 + $0x140] sm:$0xff]
        %v1482 = vld [vmem:[%s8 + $0x148] sm:$0xff]
        %v1483 = vld [vmem:[%s8 + $0x150] sm:$0xff]
        %v1484 = vld [vmem:[%s8 + $0x158] sm:$0xff]
        %vm1485 = vcmask 392192
        %v1487 = vsel %vm1485, %v1440, 0
        %1489 = vmatprep.subr.mxu0 %v1442
        %1490 = vmatpush1.msra.mxu0 %v1441
        %1491 = vmatprep.subr.mxu0 %v1444
        %1492 = vmatpush1.msra.mxu0 %v1443
        %1493 = vmatprep.subr.mxu0 %v1446
        %1494 = vmatpush1.msra.mxu0 %v1445
        %1495 = vmatprep.subr.mxu0 %v1448
        %1496 = vmatpush1.msra.mxu0 %v1447
        %1497 = vmatprep.subr.mxu0 %v1450
        %1498 = vmatpush1.msra.mxu0 %v1449
        %1499 = vmatprep.subr.mxu0 %v1452
        %1500 = vmatpush1.msra.mxu0 %v1451
        %1501 = vmatprep.subr.mxu0 %v1454
        %1502 = vmatpush1.msra.mxu0 %v1453
        %1503 = vmatprep.subr.mxu0 %v1456
        %1504 = vmatpush1.msra.mxu0 %v1455
        %1505 = vmatprep.subr.mxu0 %v1458
        %1506 = vmatpush1.msra.mxu0 %v1457
        %1507 = vmatprep.subr.mxu0 %v1460
        %1508 = vmatpush1.msra.mxu0 %v1459
        %1509 = vmatprep.subr.mxu0 %v1462
        %1510 = vmatpush1.msra.mxu0 %v1461
        %1511 = vmatprep.subr.mxu0 %v1464
        %1512 = vmatpush1.msra.mxu0 %v1463
        %1513 = vmatprep.subr.mxu0 %v1466
        %1514 = vmatpush1.msra.mxu0 %v1465
        %1515 = vmatprep.subr.mxu0 %v1468
        %1516 = vmatpush1.msra.mxu0 %v1467
        %1517 = vmatprep.subr.mxu0 %v1470
        %1518 = vmatpush1.msra.mxu0 %v1469
        %1519 = vmatprep.subr.mxu0 %v1472
        %1520 = vmatpush1.msra.mxu0 %v1471
        %1521 = vmatprep.subr.mxu0 %v1474
        %1522 = vmatpush1.msra.mxu0 %v1473
        %1523 = vmatprep.subr.mxu0 %v1476
        %1524 = vmatpush1.msra.mxu0 %v1475
        %1525 = vmatprep.subr.mxu0 %v1478
        %1526 = vmatpush1.msra.mxu0 %v1477
        %1527 = vmatprep.subr.mxu0 %v1480
        %1528 = vmatpush1.msra.mxu0 %v1479
        %1529 = vmatprep.subr.mxu0 %v1482
        %1530 = vmatpush1.msra.mxu0 %v1481
        %1531 = vmatprep.subr.mxu0 %v1484
        %1532 = vmatpush1.msra.mxu0 %v1483
        %1533 = vmatprep.subr.mxu0 0.0
        %1534 = vmatpush1.msra.mxu0 0.0
        %1535 = vmatprep.subr.mxu0 0.0
        %1536 = vmatpush1.msra.mxu0 0.0
        %1537 = vmatprep.subr.mxu0 0.0
        %1538 = vmatpush1.msra.mxu0 0.0
        %1539 = vmatprep.subr.mxu0 0.0
        %1540 = vmatpush1.msra.mxu0 0.0
        %1541 = vmatprep.subr.mxu0 0.0
        %1542 = vmatpush1.msra.mxu0 0.0
        %1543 = vmatprep.subr.mxu0 0.0
        %1544 = vmatpush1.msra.mxu0 0.0
        %1545 = vmatprep.subr.mxu0 0.0
        %1546 = vmatpush1.msra.mxu0 0.0
        %1547 = vmatprep.subr.mxu0 0.0
        %1548 = vmatpush1.msra.mxu0 0.0
        %1549 = vmatprep.subr.mxu0 0.0
        %1550 = vmatpush1.msra.mxu0 0.0
        %1551 = vmatprep.subr.mxu0 0.0
        %1552 = vmatpush1.msra.mxu0 0.0
        %1553 = vmatprep.mubr.f32.mxu0 %v1487
        %1554 = vmatmul.mubr.f32.gmra.mrb[0].mxu0 %v1439
        %v1555 = vpop.f32.mrb[0].mxu0
        %v1556 = vadd.f32 0.0, %v1555
        %v1557 = vpop.f32.mrb[0].mxu0
        %v1558 = vadd.f32 0.0, %v1557
        %1559 = vdwg.mxu0
        %v1560 = vmax.f32 %v1556, %v1558
        %v1562 = vrot.slane %v1560, 1
        %v1564 = vrot.slane %v1560, 2
        %v1566 = vrot.slane %v1560, 3
        %v1568 = vrot.slane %v1560, 4
        %v1570 = vld [vmem:[%s9] sm:$0xff]
        %v1571 = vld [vmem:[%s9 + $0x8] sm:$0xff]
        %v1572 = vld [vmem:[%s9 + $0x10] sm:$0xff]
        %v1573 = vld [vmem:[%s9 + $0x18] sm:$0xff]
        %v1574 = vld [vmem:[%s9 + $0x20] sm:$0xff]
        %v1575 = vld [vmem:[%s9 + $0x28] sm:$0xff]
        %v1576 = vld [vmem:[%s9 + $0x30] sm:$0xff]
        %v1577 = vld [vmem:[%s9 + $0x38] sm:$0xff]
        %v1578 = vld [vmem:[%s9 + $0x40] sm:$0xff]
        %v1579 = vld [vmem:[%s9 + $0x48] sm:$0xff]
        %v1580 = vld [vmem:[%s9 + $0x50] sm:$0xff]
        %v1581 = vld [vmem:[%s9 + $0x58] sm:$0xff]
        %v1582 = vld [vmem:[%s9 + $0x60] sm:$0xff]
        %v1583 = vld [vmem:[%s9 + $0x68] sm:$0xff]
        %v1584 = vld [vmem:[%s9 + $0x70] sm:$0xff]
        %v1585 = vld [vmem:[%s9 + $0x78] sm:$0xff]
        %v1586 = vld [vmem:[%s9 + $0x80] sm:$0xff]
        %v1587 = vld [vmem:[%s9 + $0x88] sm:$0xff]
        %v1588 = vld [vmem:[%s9 + $0x90] sm:$0xff]
        %v1589 = vld [vmem:[%s9 + $0x98] sm:$0xff]
        %v1590 = vld [vmem:[%s9 + $0xa0] sm:$0xff]
        %v1591 = vld [vmem:[%s9 + $0xa8] sm:$0xff]
        %v1592 = vld [vmem:[%s9 + $0xb0] sm:$0xff]
        %v1593 = vld [vmem:[%s9 + $0xb8] sm:$0xff]
        %v1594 = vld [vmem:[%s9 + $0xc0] sm:$0xff]
        %v1595 = vld [vmem:[%s9 + $0xc8] sm:$0xff]
        %v1596 = vld [vmem:[%s9 + $0xd0] sm:$0xff]
        %v1597 = vld [vmem:[%s9 + $0xd8] sm:$0xff]
        %v1598 = vld [vmem:[%s9 + $0xe0] sm:$0xff]
        %v1599 = vld [vmem:[%s9 + $0xe8] sm:$0xff]
        %v1600 = vld [vmem:[%s9 + $0xf0] sm:$0xff]
        %v1601 = vld [vmem:[%s9 + $0xf8] sm:$0xff]
        %v1602 = vld [vmem:[%s9 + $0x100] sm:$0xff]
        %v1603 = vld [vmem:[%s9 + $0x108] sm:$0xff]
        %v1604 = vld [vmem:[%s9 + $0x110] sm:$0xff]
        %v1605 = vld [vmem:[%s9 + $0x118] sm:$0xff]
        %v1606 = vld [vmem:[%s9 + $0x120] sm:$0xff]
        %v1607 = vld [vmem:[%s9 + $0x128] sm:$0xff]
        %v1608 = vld [vmem:[%s9 + $0x130] sm:$0xff]
        %v1609 = vld [vmem:[%s9 + $0x138] sm:$0xff]
        %v1610 = vld [vmem:[%s9 + $0x140] sm:$0xff]
        %v1611 = vld [vmem:[%s9 + $0x148] sm:$0xff]
        %v1612 = vld [vmem:[%s9 + $0x150] sm:$0xff]
        %v1613 = vld [vmem:[%s9 + $0x158] sm:$0xff]
        %v1614 = vld [vmem:[%s9 + $0x160] sm:$0xff]
        %v1615 = vld [vmem:[%s9 + $0x168] sm:$0xff]
        %v1616 = vld [vmem:[%s9 + $0x170] sm:$0xff]
        %v1617 = vld [vmem:[%s9 + $0x178] sm:$0xff]
        %v1618 = vld [vmem:[%s9 + $0x180] sm:$0xff]
        %v1619 = vld [vmem:[%s9 + $0x188] sm:$0xff]
        %v1620 = vld [vmem:[%s9 + $0x190] sm:$0xff]
        %v1621 = vld [vmem:[%s9 + $0x198] sm:$0xff]
        %v1622 = vld [vmem:[%s9 + $0x1a0] sm:$0xff]
        %v1623 = vld [vmem:[%s9 + $0x1a8] sm:$0xff]
        %v1624 = vld [vmem:[%s9 + $0x1b0] sm:$0xff]
        %v1625 = vld [vmem:[%s9 + $0x1b8] sm:$0xff]
        %v1626 = vld [vmem:[%s9 + $0x1c0] sm:$0xff]
        %v1627 = vld [vmem:[%s9 + $0x1c8] sm:$0xff]
        %v1628 = vld [vmem:[%s9 + $0x1d0] sm:$0xff]
        %v1629 = vld [vmem:[%s9 + $0x1d8] sm:$0xff]
        %v1630 = vld [vmem:[%s9 + $0x1e0] sm:$0xff]
        %v1631 = vld [vmem:[%s9 + $0x1e8] sm:$0xff]
        %v1632 = vld [vmem:[%s9 + $0x1f0] sm:$0xff]
        %v1633 = vld [vmem:[%s9 + $0x1f8] sm:$0xff]
        %v1634 = vld [vmem:[%s9 + $0x200] sm:$0xff]
        %v1635 = vld [vmem:[%s9 + $0x208] sm:$0xff]
        %v1636 = vld [vmem:[%s9 + $0x210] sm:$0xff]
        %v1637 = vld [vmem:[%s9 + $0x218] sm:$0xff]
        %v1638 = vld [vmem:[%s9 + $0x220] sm:$0xff]
        %v1639 = vld [vmem:[%s9 + $0x228] sm:$0xff]
        %v1640 = vld [vmem:[%s9 + $0x230] sm:$0xff]
        %v1641 = vld [vmem:[%s9 + $0x238] sm:$0xff]
        %v1642 = vld [vmem:[%s9 + $0x240] sm:$0xff]
        %v1643 = vld [vmem:[%s9 + $0x248] sm:$0xff]
        %v1644 = vld [vmem:[%s9 + $0x250] sm:$0xff]
        %v1645 = vld [vmem:[%s9 + $0x258] sm:$0xff]
        %v1646 = vld [vmem:[%s9 + $0x260] sm:$0xff]
        %v1647 = vld [vmem:[%s9 + $0x268] sm:$0xff]
        %v1648 = vld [vmem:[%s9 + $0x270] sm:$0xff]
        %v1649 = vld [vmem:[%s9 + $0x278] sm:$0xff]
        %v1650 = vld [vmem:[%s10] sm:$0x1]
        %1651 = vmatprep.subr.mxu0 0.0
        %1652 = vmatpush1.msra.mxu0 %v1570
        %1653 = vmatprep.subr.mxu0 0.0
        %1654 = vmatpush1.msra.mxu0 %v1571
        %1655 = vmatprep.subr.mxu0 0.0
        %1656 = vmatpush1.msra.mxu0 %v1572
        %1657 = vmatprep.subr.mxu0 0.0
        %1658 = vmatpush1.msra.mxu0 %v1573
        %1659 = vmatprep.subr.mxu0 0.0
        %1660 = vmatpush1.msra.mxu0 %v1574
        %1661 = vmatprep.subr.mxu0 0.0
        %1662 = vmatpush1.msra.mxu0 %v1575
        %1663 = vmatprep.subr.mxu0 0.0
        %1664 = vmatpush1.msra.mxu0 %v1576
        %1665 = vmatprep.subr.mxu0 0.0
        %1666 = vmatpush1.msra.mxu0 %v1577
        %1667 = vmatprep.subr.mxu0 0.0
        %1668 = vmatpush1.msra.mxu0 %v1578
        %1669 = vmatprep.subr.mxu0 0.0
        %1670 = vmatpush1.msra.mxu0 %v1579
        %1671 = vmatprep.subr.mxu0 0.0
        %1672 = vmatpush1.msra.mxu0 %v1580
        %1673 = vmatprep.subr.mxu0 0.0
        %1674 = vmatpush1.msra.mxu0 %v1581
        %1675 = vmatprep.subr.mxu0 0.0
        %1676 = vmatpush1.msra.mxu0 %v1582
        %1677 = vmatprep.subr.mxu0 0.0
        %1678 = vmatpush1.msra.mxu0 %v1583
        %1679 = vmatprep.subr.mxu0 0.0
        %1680 = vmatpush1.msra.mxu0 %v1584
        %1681 = vmatprep.subr.mxu0 0.0
        %1682 = vmatpush1.msra.mxu0 %v1585
        %1683 = vmatprep.subr.mxu0 0.0
        %1684 = vmatpush1.msra.mxu0 %v1586
        %1685 = vmatprep.subr.mxu0 0.0
        %1686 = vmatpush1.msra.mxu0 %v1587
        %1687 = vmatprep.subr.mxu0 0.0
        %1688 = vmatpush1.msra.mxu0 %v1588
        %1689 = vmatprep.subr.mxu0 0.0
        %1690 = vmatpush1.msra.mxu0 %v1589
        %1691 = vmatprep.subr.mxu0 0.0
        %1692 = vmatpush1.msra.mxu0 %v1590
        %1693 = vmatprep.subr.mxu0 0.0
        %1694 = vmatpush1.msra.mxu0 %v1591
        %1695 = vmatprep.subr.mxu0 0.0
        %1696 = vmatpush1.msra.mxu0 %v1592
        %1697 = vmatprep.subr.mxu0 0.0
        %1698 = vmatpush1.msra.mxu0 %v1593
        %1699 = vmatprep.subr.mxu0 0.0
        %1700 = vmatpush1.msra.mxu0 %v1594
        %1701 = vmatprep.subr.mxu0 0.0
        %1702 = vmatpush1.msra.mxu0 %v1595
        %1703 = vmatprep.subr.mxu0 0.0
        %1704 = vmatpush1.msra.mxu0 %v1596
        %1705 = vmatprep.subr.mxu0 0.0
        %1706 = vmatpush1.msra.mxu0 %v1597
        %1707 = vmatprep.subr.mxu0 0.0
        %1708 = vmatpush1.msra.mxu0 %v1598
        %1709 = vmatprep.subr.mxu0 0.0
        %1710 = vmatpush1.msra.mxu0 %v1599
        %1711 = vmatprep.subr.mxu0 0.0
        %1712 = vmatpush1.msra.mxu0 %v1600
        %1713 = vmatprep.subr.mxu0 0.0
        %1714 = vmatpush1.msra.mxu0 %v1601
        %1715 = vmatprep.mubr.f32.mxu0 %v1562
        %1716 = vmatmul.mubr.f32.gmra.mrb[0].mxu0 %v1560
        %v1717 = vpop.f32.mrb[0].mxu0
        %v1718 = vadd.f32 %v1650, %v1717
        %v1719 = vpop.f32.mrb[0].mxu0
        %1720 = vdwg.mxu0
        %1721 = vmatprep.subr.mxu0 0.0
        %1722 = vmatpush1.msra.mxu0 %v1602
        %1723 = vmatprep.subr.mxu0 0.0
        %1724 = vmatpush1.msra.mxu0 %v1603
        %1725 = vmatprep.subr.mxu0 0.0
        %1726 = vmatpush1.msra.mxu0 %v1604
        %1727 = vmatprep.subr.mxu0 0.0
        %1728 = vmatpush1.msra.mxu0 %v1605
        %1729 = vmatprep.subr.mxu0 0.0
        %1730 = vmatpush1.msra.mxu0 %v1606
        %1731 = vmatprep.subr.mxu0 0.0
        %1732 = vmatpush1.msra.mxu0 %v1607
        %1733 = vmatprep.subr.mxu0 0.0
        %1734 = vmatpush1.msra.mxu0 %v1608
        %1735 = vmatprep.subr.mxu0 0.0
        %1736 = vmatpush1.msra.mxu0 %v1609
        %1737 = vmatprep.subr.mxu0 0.0
        %1738 = vmatpush1.msra.mxu0 %v1610
        %1739 = vmatprep.subr.mxu0 0.0
        %1740 = vmatpush1.msra.mxu0 %v1611
        %1741 = vmatprep.subr.mxu0 0.0
        %1742 = vmatpush1.msra.mxu0 %v1612
        %1743 = vmatprep.subr.mxu0 0.0
        %1744 = vmatpush1.msra.mxu0 %v1613
        %1745 = vmatprep.subr.mxu0 0.0
        %1746 = vmatpush1.msra.mxu0 %v1614
        %1747 = vmatprep.subr.mxu0 0.0
        %1748 = vmatpush1.msra.mxu0 %v1615
        %1749 = vmatprep.subr.mxu0 0.0
        %1750 = vmatpush1.msra.mxu0 %v1616
        %1751 = vmatprep.subr.mxu0 0.0
        %1752 = vmatpush1.msra.mxu0 %v1617
        %1753 = vmatprep.subr.mxu0 0.0
        %1754 = vmatpush1.msra.mxu0 %v1618
        %1755 = vmatprep.subr.mxu0 0.0
        %1756 = vmatpush1.msra.mxu0 %v1619
        %1757 = vmatprep.subr.mxu0 0.0
        %1758 = vmatpush1.msra.mxu0 %v1620
        %1759 = vmatprep.subr.mxu0 0.0
        %1760 = vmatpush1.msra.mxu0 %v1621
        %1761 = vmatprep.subr.mxu0 0.0
        %1762 = vmatpush1.msra.mxu0 %v1622
        %1763 = vmatprep.subr.mxu0 0.0
        %1764 = vmatpush1.msra.mxu0 %v1623
        %1765 = vmatprep.subr.mxu0 0.0
        %1766 = vmatpush1.msra.mxu0 %v1624
        %1767 = vmatprep.subr.mxu0 0.0
        %1768 = vmatpush1.msra.mxu0 %v1625
        %1769 = vmatprep.subr.mxu0 0.0
        %1770 = vmatpush1.msra.mxu0 %v1626
        %1771 = vmatprep.subr.mxu0 0.0
        %1772 = vmatpush1.msra.mxu0 %v1627
        %1773 = vmatprep.subr.mxu0 0.0
        %1774 = vmatpush1.msra.mxu0 %v1628
        %1775 = vmatprep.subr.mxu0 0.0
        %1776 = vmatpush1.msra.mxu0 %v1629
        %1777 = vmatprep.subr.mxu0 0.0
        %1778 = vmatpush1.msra.mxu0 %v1630
        %1779 = vmatprep.subr.mxu0 0.0
        %1780 = vmatpush1.msra.mxu0 %v1631
        %1781 = vmatprep.subr.mxu0 0.0
        %1782 = vmatpush1.msra.mxu0 %v1632
        %1783 = vmatprep.subr.mxu0 0.0
        %1784 = vmatpush1.msra.mxu0 %v1633
        %1785 = vmatprep.mubr.f32.mxu0 %v1566
        %1786 = vmatmul.mubr.f32.gmra.mrb[0].mxu0 %v1564
        %v1787 = vpop.f32.mrb[0].mxu0
        %v1788 = vadd.f32 %v1718, %v1787
        %v1789 = vpop.f32.mrb[0].mxu0
        %1790 = vdwg.mxu0
        %1791 = vmatprep.subr.mxu0 0.0
        %1792 = vmatpush1.msra.mxu0 %v1634
        %1793 = vmatprep.subr.mxu0 0.0
        %1794 = vmatpush1.msra.mxu0 %v1635
        %1795 = vmatprep.subr.mxu0 0.0
        %1796 = vmatpush1.msra.mxu0 %v1636
        %1797 = vmatprep.subr.mxu0 0.0
        %1798 = vmatpush1.msra.mxu0 %v1637
        %1799 = vmatprep.subr.mxu0 0.0
        %1800 = vmatpush1.msra.mxu0 %v1638
        %1801 = vmatprep.subr.mxu0 0.0
        %1802 = vmatpush1.msra.mxu0 %v1639
        %1803 = vmatprep.subr.mxu0 0.0
        %1804 = vmatpush1.msra.mxu0 %v1640
        %1805 = vmatprep.subr.mxu0 0.0
        %1806 = vmatpush1.msra.mxu0 %v1641
        %1807 = vmatprep.subr.mxu0 0.0
        %1808 = vmatpush1.msra.mxu0 %v1642
        %1809 = vmatprep.subr.mxu0 0.0
        %1810 = vmatpush1.msra.mxu0 %v1643
        %1811 = vmatprep.subr.mxu0 0.0
        %1812 = vmatpush1.msra.mxu0 %v1644
        %1813 = vmatprep.subr.mxu0 0.0
        %1814 = vmatpush1.msra.mxu0 %v1645
        %1815 = vmatprep.subr.mxu0 0.0
        %1816 = vmatpush1.msra.mxu0 %v1646
        %1817 = vmatprep.subr.mxu0 0.0
        %1818 = vmatpush1.msra.mxu0 %v1647
        %1819 = vmatprep.subr.mxu0 0.0
        %1820 = vmatpush1.msra.mxu0 %v1648
        %1821 = vmatprep.subr.mxu0 0.0
        %1822 = vmatpush1.msra.mxu0 %v1649
        %1823 = vmatprep.subr.mxu0 0.0
        %1824 = vmatpush1.msra.mxu0 0.0
        %1825 = vmatprep.subr.mxu0 0.0
        %1826 = vmatpush1.msra.mxu0 0.0
        %1827 = vmatprep.subr.mxu0 0.0
        %1828 = vmatpush1.msra.mxu0 0.0
        %1829 = vmatprep.subr.mxu0 0.0
        %1830 = vmatpush1.msra.mxu0 0.0
        %1831 = vmatprep.subr.mxu0 0.0
        %1832 = vmatpush1.msra.mxu0 0.0
        %1833 = vmatprep.subr.mxu0 0.0
        %1834 = vmatpush1.msra.mxu0 0.0
        %1835 = vmatprep.subr.mxu0 0.0
        %1836 = vmatpush1.msra.mxu0 0.0
        %1837 = vmatprep.subr.mxu0 0.0
        %1838 = vmatpush1.msra.mxu0 0.0
        %1839 = vmatprep.subr.mxu0 0.0
        %1840 = vmatpush1.msra.mxu0 0.0
        %1841 = vmatprep.subr.mxu0 0.0
        %1842 = vmatpush1.msra.mxu0 0.0
        %1843 = vmatprep.subr.mxu0 0.0
        %1844 = vmatpush1.msra.mxu0 0.0
        %1845 = vmatprep.subr.mxu0 0.0
        %1846 = vmatpush1.msra.mxu0 0.0
        %1847 = vmatprep.subr.mxu0 0.0
        %1848 = vmatpush1.msra.mxu0 0.0
        %1849 = vmatprep.subr.mxu0 0.0
        %1850 = vmatpush1.msra.mxu0 0.0
        %1851 = vmatprep.subr.mxu0 0.0
        %1852 = vmatpush1.msra.mxu0 0.0
        %1853 = vmatprep.subr.mxu0 0.0
        %1854 = vmatpush1.msra.mxu0 0.0
        %1855 = vmatprep.mubr.f32.mxu0 0.0
        %1856 = vmatmul.mubr.f32.gmra.mrb[0].mxu0 %v1568
        %v1857 = vpop.f32.mrb[0].mxu0
        %v1858 = vadd.f32 %v1788, %v1857
        %v1859 = vpop.f32.mrb[0].mxu0
        %1860 = vdwg.mxu0
        %v1861 = vmax.f32 %v1858, 0.0
        %v1862 = vld [vmem:[%s11] sm:$0xff]
        %v1863 = vld [vmem:[%s11 + $0x8] sm:$0xff]
        %v1864 = vld [vmem:[%s11 + $0x10] sm:$0xff]
        %v1865 = vld [vmem:[%s11 + $0x18] sm:$0xff]
        %v1866 = vld [vmem:[%s11 + $0x20] sm:$0xff]
        %v1867 = vld [vmem:[%s11 + $0x28] sm:$0xff]
        %v1868 = vld [vmem:[%s11 + $0x30] sm:$0xff]
        %v1869 = vld [vmem:[%s11 + $0x38] sm:$0xff]
        %v1870 = vld [vmem:[%s11 + $0x40] sm:$0xff]
        %v1871 = vld [vmem:[%s11 + $0x48] sm:$0xff]
        %v1872 = vld [vmem:[%s11 + $0x50] sm:$0xff]
        %v1873 = vld [vmem:[%s11 + $0x58] sm:$0xff]
        %v1874 = vld [vmem:[%s11 + $0x60] sm:$0xff]
        %v1875 = vld [vmem:[%s11 + $0x68] sm:$0xff]
        %v1876 = vld [vmem:[%s11 + $0x70] sm:$0xff]
        %v1877 = vld [vmem:[%s12] sm:$0x1]
        %vm1878 = vcmask 982016
        %v1880 = vsel %vm1878, %v1861, 0
        %1882 = vmatprep.subr.mxu0 0.0
        %1883 = vmatpush1.msra.mxu0 %v1862
        %1884 = vmatprep.subr.mxu0 0.0
        %1885 = vmatpush1.msra.mxu0 %v1863
        %1886 = vmatprep.subr.mxu0 0.0
        %1887 = vmatpush1.msra.mxu0 %v1864
        %1888 = vmatprep.subr.mxu0 0.0
        %1889 = vmatpush1.msra.mxu0 %v1865
        %1890 = vmatprep.subr.mxu0 0.0
        %1891 = vmatpush1.msra.mxu0 %v1866
        %1892 = vmatprep.subr.mxu0 0.0
        %1893 = vmatpush1.msra.mxu0 %v1867
        %1894 = vmatprep.subr.mxu0 0.0
        %1895 = vmatpush1.msra.mxu0 %v1868
        %1896 = vmatprep.subr.mxu0 0.0
        %1897 = vmatpush1.msra.mxu0 %v1869
        %1898 = vmatprep.subr.mxu0 0.0
        %1899 = vmatpush1.msra.mxu0 %v1870
        %1900 = vmatprep.subr.mxu0 0.0
        %1901 = vmatpush1.msra.mxu0 %v1871
        %1902 = vmatprep.subr.mxu0 0.0
        %1903 = vmatpush1.msra.mxu0 %v1872
        %1904 = vmatprep.subr.mxu0 0.0
        %1905 = vmatpush1.msra.mxu0 %v1873
        %1906 = vmatprep.subr.mxu0 0.0
        %1907 = vmatpush1.msra.mxu0 %v1874
        %1908 = vmatprep.subr.mxu0 0.0
        %1909 = vmatpush1.msra.mxu0 %v1875
        %1910 = vmatprep.subr.mxu0 0.0
        %1911 = vmatpush1.msra.mxu0 %v1876
        %1912 = vmatprep.subr.mxu0 0.0
        %1913 = vmatpush1.msra.mxu0 0.0
        %1914 = vmatprep.subr.mxu0 0.0
        %1915 = vmatpush1.msra.mxu0 0.0
        %1916 = vmatprep.subr.mxu0 0.0
        %1917 = vmatpush1.msra.mxu0 0.0
        %1918 = vmatprep.subr.mxu0 0.0
        %1919 = vmatpush1.msra.mxu0 0.0
        %1920 = vmatprep.subr.mxu0 0.0
        %1921 = vmatpush1.msra.mxu0 0.0
        %1922 = vmatprep.subr.mxu0 0.0
        %1923 = vmatpush1.msra.mxu0 0.0
        %1924 = vmatprep.subr.mxu0 0.0
        %1925 = vmatpush1.msra.mxu0 0.0
        %1926 = vmatprep.subr.mxu0 0.0
        %1927 = vmatpush1.msra.mxu0 0.0
        %1928 = vmatprep.subr.mxu0 0.0
        %1929 = vmatpush1.msra.mxu0 0.0
        %1930 = vmatprep.subr.mxu0 0.0
        %1931 = vmatpush1.msra.mxu0 0.0
        %1932 = vmatprep.subr.mxu0 0.0
        %1933 = vmatpush1.msra.mxu0 0.0
        %1934 = vmatprep.subr.mxu0 0.0
        %1935 = vmatpush1.msra.mxu0 0.0
        %1936 = vmatprep.subr.mxu0 0.0
        %1937 = vmatpush1.msra.mxu0 0.0
        %1938 = vmatprep.subr.mxu0 0.0
        %1939 = vmatpush1.msra.mxu0 0.0
        %1940 = vmatprep.subr.mxu0 0.0
        %1941 = vmatpush1.msra.mxu0 0.0
        %1942 = vmatprep.subr.mxu0 0.0
        %1943 = vmatpush1.msra.mxu0 0.0
        %1944 = vmatprep.subr.mxu0 0.0
        %1945 = vmatpush1.msra.mxu0 0.0
        %1946 = vmatprep.mubr.f32.mxu0 0.0
        %1947 = vmatmul.mubr.f32.gmra.mrb[0].mxu0 %v1880
        %v1948 = vpop.f32.mrb[0].mxu0
        %v1949 = vadd.f32 %v1877, %v1948
        %v1950 = vpop.f32.mrb[0].mxu0
        %1951 = vdwg.mxu0
        %v1952 = vmax.f32 %v1949, 0.0
        %v1953 = vld [vmem:[%s13] sm:$0xff]
        %v1954 = vld [vmem:[%s13 + $0x8] sm:$0xff]
        %v1955 = vld [vmem:[%s13 + $0x10] sm:$0xff]
        %v1956 = vld [vmem:[%s13 + $0x18] sm:$0xff]
        %v1957 = vld [vmem:[%s13 + $0x20] sm:$0xff]
        %v1958 = vld [vmem:[%s13 + $0x28] sm:$0xff]
        %v1959 = vld [vmem:[%s13 + $0x30] sm:$0xff]
        %v1960 = vld [vmem:[%s13 + $0x38] sm:$0xff]
        %v1961 = vld [vmem:[%s13 + $0x40] sm:$0xff]
        %v1962 = vld [vmem:[%s13 + $0x48] sm:$0xff]
        %v1963 = vld [vmem:[%s13 + $0x50] sm:$0xf]
        %v1964 = vld [vmem:[%s14] sm:$0x1]
        %vm1965 = vcmask 687104
        %v1967 = vsel %vm1965, %v1952, 0
        %v1970 = vsel %vm982, %v1963, 0
        %1972 = vmatprep.subr.mxu0 0.0
        %1973 = vmatpush1.msra.mxu0 %v1953
        %1974 = vmatprep.subr.mxu0 0.0
        %1975 = vmatpush1.msra.mxu0 %v1954
        %1976 = vmatprep.subr.mxu0 0.0
        %1977 = vmatpush1.msra.mxu0 %v1955
        %1978 = vmatprep.subr.mxu0 0.0
        %1979 = vmatpush1.msra.mxu0 %v1956
        %1980 = vmatprep.subr.mxu0 0.0
        %1981 = vmatpush1.msra.mxu0 %v1957
        %1982 = vmatprep.subr.mxu0 0.0
        %1983 = vmatpush1.msra.mxu0 %v1958
        %1984 = vmatprep.subr.mxu0 0.0
        %1985 = vmatpush1.msra.mxu0 %v1959
        %1986 = vmatprep.subr.mxu0 0.0
        %1987 = vmatpush1.msra.mxu0 %v1960
        %1988 = vmatprep.subr.mxu0 0.0
        %1989 = vmatpush1.msra.mxu0 %v1961
        %1990 = vmatprep.subr.mxu0 0.0
        %1991 = vmatpush1.msra.mxu0 %v1962
        %1992 = vmatprep.subr.mxu0 0.0
        %1993 = vmatpush1.msra.mxu0 %v1970
        %1994 = vmatprep.subr.mxu0 0.0
        %1995 = vmatpush1.msra.mxu0 0.0
        %1996 = vmatprep.subr.mxu0 0.0
        %1997 = vmatpush1.msra.mxu0 0.0
        %1998 = vmatprep.subr.mxu0 0.0
        %1999 = vmatpush1.msra.mxu0 0.0
        %2000 = vmatprep.subr.mxu0 0.0
        %2001 = vmatpush1.msra.mxu0 0.0
        %2002 = vmatprep.subr.mxu0 0.0
        %2003 = vmatpush1.msra.mxu0 0.0
        %2004 = vmatprep.subr.mxu0 0.0
        %2005 = vmatpush1.msra.mxu0 0.0
        %2006 = vmatprep.subr.mxu0 0.0
        %2007 = vmatpush1.msra.mxu0 0.0
        %2008 = vmatprep.subr.mxu0 0.0
        %2009 = vmatpush1.msra.mxu0 0.0
        %2010 = vmatprep.subr.mxu0 0.0
        %2011 = vmatpush1.msra.mxu0 0.0
        %2012 = vmatprep.subr.mxu0 0.0
        %2013 = vmatpush1.msra.mxu0 0.0
        %2014 = vmatprep.subr.mxu0 0.0
        %2015 = vmatpush1.msra.mxu0 0.0
        %2016 = vmatprep.subr.mxu0 0.0
        %2017 = vmatpush1.msra.mxu0 0.0
        %2018 = vmatprep.subr.mxu0 0.0
        %2019 = vmatpush1.msra.mxu0 0.0
        %2020 = vmatprep.subr.mxu0 0.0
        %2021 = vmatpush1.msra.mxu0 0.0
        %2022 = vmatprep.subr.mxu0 0.0
        %2023 = vmatpush1.msra.mxu0 0.0
        %2024 = vmatprep.subr.mxu0 0.0
        %2025 = vmatpush1.msra.mxu0 0.0
        %2026 = vmatprep.subr.mxu0 0.0
        %2027 = vmatpush1.msra.mxu0 0.0
        %2028 = vmatprep.subr.mxu0 0.0
        %2029 = vmatpush1.msra.mxu0 0.0
        %2030 = vmatprep.subr.mxu0 0.0
        %2031 = vmatpush1.msra.mxu0 0.0
        %2032 = vmatprep.subr.mxu0 0.0
        %2033 = vmatpush1.msra.mxu0 0.0
        %2034 = vmatprep.subr.mxu0 0.0
        %2035 = vmatpush1.msra.mxu0 0.0
        %2036 = vmatprep.mubr.f32.mxu0 0.0
        %2037 = vmatmul.mubr.f32.gmra.mrb[0].mxu0 %v1967
        %v2038 = vpop.f32.mrb[0].mxu0
        %v2039 = vadd.f32 %v1964, %v2038
        %v2040 = vpop.f32.mrb[0].mxu0
        %2041 = vdwg.mxu0
        %2042 = vst [vmem:[%s486] sm:$0x1] %v2039
        %s2043 = sand.u32 %s357, 1
        %s2044 = scalar_lea.sflag [#allocation3], %s2043
        %s2045 = sand.u32 %s357, 1
        %s2046 = scalar_lea.vmem [#allocation2], %s2045
        // Predicated region
        $region81: #{lenet_forward.1} parent=79 // pred_check
          %p2047 = pneg %p367
        $region82: #{lenet_forward.1} parent=79 // pred_check_branch
          %2049 = sbr.rel (%p2047) target = $region84
        $region83: #{lenet_forward.1} parent=79 // pred_region
          %s2051 = ssub.s32 16, 16
          %2052 = vsyncadd %s2044, %s2051
          %s2053 = smul.addr %s29, 16
          %s2054 = scalar_lea.hbm %s15, %s2053
          %s2056 = sshll.u32 %s2046, 4
          %s2057 = int_to_ptr.vmem [resolvable:$true] %s2056
          %2059 = dma.vmem_to_hbm [thread:$0]  %s2057, 16, %s2054, %s2044
        $region84: #{lenet_forward.1} parent=79 // pred_fallthru
          _
      $region80: #{lenet_forward.1} parent=5 // pred_fallthru
        _
      %p2060 = scmp.le.s32.totalorder 2, %s24
      // Predicated region
      $region85: #{lenet_forward.1} parent=5 // pred_check
        %p2061 = pneg %p2060
      $region86: #{lenet_forward.1} parent=5 // pred_check_branch
        %2063 = sbr.rel (%p2061) target = $region88
      $region87: #{lenet_forward.1} parent=5 // pred_region
        %s2064 = ssub.s32 %s24, 2
        // Predicated region
        $region89: #{lenet_forward.1} parent=87 // pred_check
          %p2065 = pneg %p373
        $region90: #{lenet_forward.1} parent=87 // pred_check_branch
          %2067 = sbr.rel (%p2065) target = $region92
        $region91: #{lenet_forward.1} parent=87 // pred_region
          %s2068 = sand.u32 %s358, 1
          %s2069 = scalar_lea.sflag [#allocation3], %s2068
          %s2070 = sand.u32 %s358, 1
          %s2071 = scalar_lea.vmem [#allocation2], %s2070
          %2072 = dma.done %s2069, 16
        $region92: #{lenet_forward.1} parent=87 // pred_fallthru
          _
      $region88: #{lenet_forward.1} parent=5 // pred_fallthru
        _
    $region6: #{lenet_forward.1} parent=1 // loop_footer
      %s28 = sadd.s32 1, %s24
    $region7: #{lenet_forward.1} parent=1 // loop_footer_branch
      %23 = sbr.rel target = $region3
    $region8: #{lenet_forward.1} parent=1 // loop_exit
      _
    %2073 = vsyncpa [#allocation3], 1
    %s2074 = scalar_lea.sflag [#allocation3], 1
    %2075 = vsyncpa %s2074, 1

</llo_original>
